<compile_context>
chip_gen: v6e
topology: v6e:2x2x1
jax: 0.10.0
libtpu: 0.0.40
codegen_flags: <defaults>
</compile_context>

<pallas_src>
import jax
import jax.numpy as jnp
import numpy as np
from jax.experimental import pallas as pl
from jax.experimental.pallas import tpu as pltpu

EMBED_DIM = 512
HIDDEN = 12
NUM_BLOCKS = 2          # num_layers of each LSTM (module default)
GP = 32                 # per-gate lane slot; all 4 gates packed into one 128-lane vreg
G4 = 4 * GP             # 128
BP_TILE = 8             # sublane tile; batch padded up to a multiple of this


def recurrency_kernel(x_ref, h0_ref, c0_ref,
                      w1i0_ref, b10_ref, w1h0_ref, w1i1_ref, w1h1_ref, b11_ref,
                      w2i0_ref, b20_ref, w2h0_ref, w2i1_ref, w2h1_ref, b21_ref,
                      fcw_ref, fcb_ref,
                      out_ref):
    """x:[T*Bp,512] bf16 time-major | h0/c0:[2,Bp,32] f32 | weights:[*,128] bf16
       (gate g in lanes [g*32, g*32+12)) | biases:[1,128] f32 | out:[Bp,128] f32
       (real result in out[:B, :3])."""
    TBp = x_ref.shape[0]
    Bp = out_ref.shape[0]
    T = TBp // Bp

    # candidate-gate lane mask (slot 2 of 4); hoisted out of the loops
    lane = jax.lax.broadcasted_iota(jnp.int32, (Bp, G4), 1)
    cand_mask = (lane >= 2 * GP) & (lane < 3 * GP)

    def bdot(h, w):
        # tiny recurrent matmul: bf16 operands, f32 accumulation
        return jnp.dot(h.astype(jnp.bfloat16), w, preferred_element_type=jnp.float32)

    def cell(z, c):
        # z: [Bp, 128] packed f32 pre-activations (i,f,g,o in 32-lane slots); c: [Bp, 32].
        # One tanh push activates all four gates: sigmoid(x) = 0.5*tanh(0.5*x) + 0.5.
        t = jnp.tanh(jnp.where(cand_mask, z, 0.5 * z))
        act = jnp.where(cand_mask, t, 0.5 * t + 0.5)
        i = act[:, 0 * GP:1 * GP]
        f = act[:, 1 * GP:2 * GP]
        g = act[:, 2 * GP:3 * GP]
        o = act[:, 3 * GP:4 * GP]
        c_new = f * c + i * g
        h_new = o * jnp.tanh(c_new)
        return h_new, c_new

    # ---- hoisted lstm1 layer-0 input projection: one bf16 MXU matmul (bulk of FLOPs) ----
    gin1 = (jnp.dot(x_ref[...], w1i0_ref[...], preferred_element_type=jnp.float32)
            + b10_ref[...])                                  # [T*Bp, 128] f32

    # states live in vregs for the whole kernel (layer 0 = A, layer 1 = B)
    hA = h0_ref[0]
    cA = c0_ref[0]
    hB = h0_ref[1]
    cB = c0_ref[1]

    w1h0 = w1h0_ref[...]
    w1top = w1i1_ref[...]     # lstm1 layer-1 input weights      (multiply hA_new)
    w1bot = w1h1_ref[...]     # lstm1 layer-1 recurrent weights  (multiply hB_prev)
    b11 = b11_ref[...]
    w2i0 = w2i0_ref[...]
    b20 = b20_ref[...]
    w2h0 = w2h0_ref[...]
    w2top = w2i1_ref[...]
    w2bot = w2h1_ref[...]
    b21 = b21_ref[...]

    # ---- pass 1: lstm1 (2 stacked layers), fully unrolled over static T -----------------
    gin2 = []
    for t in range(T):
        # hB_prev half of the layer-1 dot depends only on last step -> overlaps with layer 0
        gB = bdot(hB, w1bot) + b11
        g0 = gin1[t * Bp:(t + 1) * Bp, :] + bdot(hA, w1h0)
        hA, cA = cell(g0, cA)
        g1 = bdot(hA, w1top) + gB
        hB, cB = cell(g1, cB)
        # lstm2 layer-0 input projection folded in here (MXU idle while EUP runs gates)
        gin2.append(bdot(hB, w2i0) + b20)

    # ---- pass 2: lstm2, initialized with lstm1 finals (h_n, c_n), as in the module ------
    for t in range(T):
        gB = bdot(hB, w2bot) + b21
        g0 = gin2[t] + bdot(hA, w2h0)
        hA, cA = cell(g0, cA)
        g1 = bdot(hA, w2top) + gB
        hB, cB = cell(g1, cB)

    # x[:, -1, :] of lstm2 output == final top-layer hidden state; then fc (lane-padded)
    out_ref[...] = (bdot(hB, fcw_ref[...]) + fcb_ref[...]).astype(out_ref.dtype)


# ---------------------------------------------------------------------------
# Wrapper: one-time layout packing (gate-slot packing, row pads, bf16) + pallas_call
# ---------------------------------------------------------------------------

def _pack_gate_cols(w):
    """[in, 4H] (gate order i,f,g,o) -> [in, 128]: gate g at lanes [g*32, g*32+H)."""
    out = jnp.zeros((w.shape[0], G4), w.dtype)
    for g in range(4):
        out = out.at[:, g * GP:g * GP + HIDDEN].set(w[:, g * HIDDEN:(g + 1) * HIDDEN])
    return out


def _pad_rows(w, rows):
    return jnp.pad(w, ((0, rows - w.shape[0]), (0, 0)))


def pack_params(params):
    """Raw [in,4H]-layout params -> kernel layout. Call ONCE at init (off the call path)."""
    def wpack(w, rows=None):
        w = _pack_gate_cols(w)
        if rows is not None:
            w = _pad_rows(w, rows)
        return w.astype(jnp.bfloat16)

    return {
        'w1i0': wpack(params['w1i0']),               # [512, 128] bf16
        'b10': _pack_gate_cols(params['b10']),       # [1, 128]  f32
        'w1h0': wpack(params['w1h0'], GP),           # [32, 128] bf16
        'w1i1': wpack(params['w1i1'], GP),
        'w1h1': wpack(params['w1h1'], GP),
        'b11': _pack_gate_cols(params['b11']),
        'w2i0': wpack(params['w2i0'], GP),
        'b20': _pack_gate_cols(params['b20']),
        'w2h0': wpack(params['w2h0'], GP),
        'w2i1': wpack(params['w2i1'], GP),
        'w2h1': wpack(params['w2h1'], GP),
        'b21': _pack_gate_cols(params['b21']),
        'fcw': jnp.pad(params['fcw'],
                       ((0, GP - HIDDEN), (0, G4 - 3))).astype(jnp.bfloat16),  # [32, 128]
        'fcb': jnp.pad(params['fcb'], ((0, 0), (0, G4 - 3))),                   # [1, 128]
    }


@jax.jit
def recurrency_block(features, robot_state, packed, h0, c0):
    """features: [B, k*512]; robot_state: [B, rs] or None; packed: pack_params(...) output;
       h0/c0: [2, B, 12]. Returns [B, 3]."""
    B = features.shape[0]
    if robot_state is not None:
        rs = robot_state.shape[-1]
        padded = jnp.pad(robot_state, ((0, 0), (1, EMBED_DIM - rs - 1)))
        features = jnp.concatenate([features, padded], axis=1)
    x = features.reshape(B, -1, EMBED_DIM)
    T = x.shape[1]
    Bp = ((B + BP_TILE - 1) // BP_TILE) * BP_TILE
    # time-major, batch padded to a full 8-sublane tile, bf16
    x = jnp.transpose(x, (1, 0, 2))
    x = jnp.pad(x, ((0, 0), (0, Bp - B), (0, 0)))
    x = x.reshape(T * Bp, EMBED_DIM).astype(jnp.bfloat16)

    h0p = jnp.pad(h0.astype(jnp.float32), ((0, 0), (0, Bp - B), (0, GP - HIDDEN)))
    c0p = jnp.pad(c0.astype(jnp.float32), ((0, 0), (0, Bp - B), (0, GP - HIDDEN)))

    args = (x, h0p, c0p,
            packed['w1i0'], packed['b10'], packed['w1h0'], packed['w1i1'],
            packed['w1h1'], packed['b11'],
            packed['w2i0'], packed['b20'], packed['w2h0'], packed['w2i1'],
            packed['w2h1'], packed['b21'],
            packed['fcw'], packed['fcb'])

    vmem = pl.BlockSpec(memory_space=pltpu.MemorySpace.VMEM)
    out = pl.pallas_call(
        recurrency_kernel,
        out_shape=jax.ShapeDtypeStruct((Bp, G4), jnp.float32),
        in_specs=[vmem] * len(args),
        out_specs=vmem,
    )(*args)
    return out[:B, :3]


# ---------------------------------------------------------------------------
# Params + pure-JAX f32 reference (mirrors the PyTorch forward)
# ---------------------------------------------------------------------------

def init_params(key):
    """Deterministic synthetic params, PyTorch-style U(-1/sqrt(H), 1/sqrt(H))."""
    k = 1.0 / np.sqrt(HIDDEN)
    ks = jax.random.split(key, 20)

    def u(kk, shape):
        return jax.random.uniform(kk, shape, jnp.float32, -k, k)

    G = 4 * HIDDEN
    return {
        # lstm1 layer 0 (input 512) and layer 1 (input 12); biases = b_ih + b_hh combined
        'w1i0': u(ks[0], (EMBED_DIM, G)), 'w1h0': u(ks[1], (HIDDEN, G)),
        'b10': u(ks[2], (1, G)) + u(ks[3], (1, G)),
        'w1i1': u(ks[4], (HIDDEN, G)), 'w1h1': u(ks[5], (HIDDEN, G)),
        'b11': u(ks[6], (1, G)) + u(ks[7], (1, G)),
        # lstm2 layers 0 and 1 (both input 12)
        'w2i0': u(ks[8], (HIDDEN, G)), 'w2h0': u(ks[9], (HIDDEN, G)),
        'b20': u(ks[10], (1, G)) + u(ks[11], (1, G)),
        'w2i1': u(ks[12], (HIDDEN, G)), 'w2h1': u(ks[13], (HIDDEN, G)),
        'b21': u(ks[14], (1, G)) + u(ks[15], (1, G)),
        # fc: Linear(H, 3)
        'fcw': u(ks[16], (HIDDEN, 3)), 'fcb': u(ks[17], (1, 3)),
    }


def _reference(features, robot_state, params, h0, c0):
    """Pure-JAX f32 reference mirroring the PyTorch forward."""
    B = features.shape[0]
    rs = robot_state.shape[-1]
    padded = jnp.pad(robot_state, ((0, 0), (1, EMBED_DIM - rs - 1)))
    x = jnp.concatenate([features, padded], axis=1).reshape(B, -1, EMBED_DIM)
    H = HIDDEN

    def cell(x_t, h, c, w_ih, w_hh, b):
        g = x_t @ w_ih + h @ w_hh + b
        i = jax.nn.sigmoid(g[:, :H])
        f = jax.nn.sigmoid(g[:, H:2 * H])
        gg = jnp.tanh(g[:, 2 * H:3 * H])
        o = jax.nn.sigmoid(g[:, 3 * H:])
        c = f * c + i * gg
        return o * jnp.tanh(c), c

    def run_lstm(x, hs, cs, layers):
        hs, cs = list(hs), list(cs)
        outs = []
        for t in range(x.shape[1]):
            inp = x[:, t, :]
            for l, (wi, wh, b) in enumerate(layers):
                hs[l], cs[l] = cell(inp, hs[l], cs[l], wi, wh, b)
                inp = hs[l]
            outs.append(inp)
        return jnp.stack(outs, axis=1), hs, cs

    l1 = [(params['w1i0'], params['w1h0'], params['b10']),
          (params['w1i1'], params['w1h1'], params['b11'])]
    l2 = [(params['w2i0'], params['w2h0'], params['b20']),
          (params['w2i1'], params['w2h1'], params['b21'])]

    y1, hn, cn = run_lstm(x, [h0[0], h0[1]], [c0[0], c0[1]], l1)
    y2, _, _ = run_lstm(y1, hn, cn, l2)
    return y2[:, -1, :] @ params['fcw'] + params['fcb']


if __name__ == "__main__":
    key = jax.random.PRNGKey(0)
    ks = jax.random.split(key, 5)

    B = 2
    feat_tokens = 3          # features carry 3 tokens of 512 -> T = 4 after robot_state concat
    rs_size = 7

    features = jax.random.normal(ks[0], (B, feat_tokens * EMBED_DIM), jnp.float32)
    robot_state = jax.random.normal(ks[1], (B, rs_size), jnp.float32)
    # TODO(synk): PyTorch draws h_0/c_0 with torch.randn per forward (CUDA RNG); here they
    # are deterministic explicit kernel inputs.
    h0 = jax.random.normal(ks[2], (NUM_BLOCKS, B, HIDDEN), jnp.float32)
    c0 = jax.random.normal(ks[3], (NUM_BLOCKS, B, HIDDEN), jnp.float32)
    params = init_params(ks[4])

    packed = pack_params(params)          # packed ONCE, hoisted off the per-forward path

    out = recurrency_block(features, robot_state, packed, h0, c0)
    out = jax.block_until_ready(out)

    ref = _reference(features, robot_state, params, h0, c0)
    assert out.shape == (B, 3), out.shape
    np.testing.assert_allclose(np.asarray(out), np.asarray(ref), rtol=2e-2, atol=2e-2)
    print("KERNEL_OK")
</pallas_src>

<mosaic_0001>
module attributes {stable_mosaic.version = 11 : i64} {
  func.func @recurrency_kernel(%arg0: memref<32x512xbf16, #tpu.memory_space<vmem>>, %arg1: memref<2x8x32xf32, #tpu.memory_space<vmem>>, %arg2: memref<2x8x32xf32, #tpu.memory_space<vmem>>, %arg3: memref<512x128xbf16, #tpu.memory_space<vmem>>, %arg4: memref<1x128xf32, #tpu.memory_space<vmem>>, %arg5: memref<32x128xbf16, #tpu.memory_space<vmem>>, %arg6: memref<32x128xbf16, #tpu.memory_space<vmem>>, %arg7: memref<32x128xbf16, #tpu.memory_space<vmem>>, %arg8: memref<1x128xf32, #tpu.memory_space<vmem>>, %arg9: memref<32x128xbf16, #tpu.memory_space<vmem>>, %arg10: memref<1x128xf32, #tpu.memory_space<vmem>>, %arg11: memref<32x128xbf16, #tpu.memory_space<vmem>>, %arg12: memref<32x128xbf16, #tpu.memory_space<vmem>>, %arg13: memref<32x128xbf16, #tpu.memory_space<vmem>>, %arg14: memref<1x128xf32, #tpu.memory_space<vmem>>, %arg15: memref<32x128xbf16, #tpu.memory_space<vmem>>, %arg16: memref<1x128xf32, #tpu.memory_space<vmem>>, %arg17: memref<8x128xf32, #tpu.memory_space<vmem>>) attributes {dimension_semantics = [], scalar_prefetch = 0 : i64, scratch_operands = 0 : i64, tpu.core_type = #tpu.core_type<tc>} {
    %0 = tpu.iota {dimensions = array<i32: 1>} : vector<8x128xi32>
    %c64_i32 = arith.constant 64 : i32
    %1 = vector.broadcast %c64_i32 : i32 to vector<8x128xi32>
    %2 = arith.cmpi sge, %0, %1 : vector<8x128xi32>
    %c96_i32 = arith.constant 96 : i32
    %3 = vector.broadcast %c96_i32 : i32 to vector<8x128xi32>
    %4 = arith.cmpi slt, %0, %3 : vector<8x128xi32>
    %5 = arith.andi %2, %4 : vector<8x128xi1>
    %c0 = arith.constant 0 : index
    %c0_0 = arith.constant 0 : index
    %6 = vector.load %arg0[%c0, %c0_0] : memref<32x512xbf16, #tpu.memory_space<vmem>>, vector<32x512xbf16>
    %c0_1 = arith.constant 0 : index
    %c0_2 = arith.constant 0 : index
    %7 = vector.load %arg3[%c0_1, %c0_2] : memref<512x128xbf16, #tpu.memory_space<vmem>>, vector<512x128xbf16>
    %cst = arith.constant dense<0.000000e+00> : vector<32x128xf32>
    %8 = tpu.matmul %6, %7, %cst {dimension_numbers = #tpu.dot_dimension_numbers<[1], [0], [0], [1], [0, 0, 1, 1], [], []>} : vector<32x512xbf16>, vector<512x128xbf16>, vector<32x128xf32> -> vector<32x128xf32>
    %c0_3 = arith.constant 0 : index
    %c0_4 = arith.constant 0 : index
    %9 = vector.load %arg4[%c0_3, %c0_4] : memref<1x128xf32, #tpu.memory_space<vmem>>, vector<1x128xf32>
    %10 = vector.broadcast %9 : vector<1x128xf32> to vector<32x128xf32>
    %11 = arith.addf %8, %10 : vector<32x128xf32>
    %c0_5 = arith.constant 0 : index
    %c0_6 = arith.constant 0 : index
    %c0_7 = arith.constant 0 : index
    %12 = vector.load %arg1[%c0_5, %c0_6, %c0_7] : memref<2x8x32xf32, #tpu.memory_space<vmem>>, vector<1x8x32xf32>
    %13 = vector.shape_cast %12 : vector<1x8x32xf32> to vector<8x32xf32>
    %c0_8 = arith.constant 0 : index
    %c0_9 = arith.constant 0 : index
    %c0_10 = arith.constant 0 : index
    %14 = vector.load %arg2[%c0_8, %c0_9, %c0_10] : memref<2x8x32xf32, #tpu.memory_space<vmem>>, vector<1x8x32xf32>
    %15 = vector.shape_cast %14 : vector<1x8x32xf32> to vector<8x32xf32>
    %c1 = arith.constant 1 : index
    %c0_11 = arith.constant 0 : index
    %c0_12 = arith.constant 0 : index
    %16 = vector.load %arg1[%c1, %c0_11, %c0_12] : memref<2x8x32xf32, #tpu.memory_space<vmem>>, vector<1x8x32xf32>
    %17 = vector.shape_cast %16 : vector<1x8x32xf32> to vector<8x32xf32>
    %c1_13 = arith.constant 1 : index
    %c0_14 = arith.constant 0 : index
    %c0_15 = arith.constant 0 : index
    %18 = vector.load %arg2[%c1_13, %c0_14, %c0_15] : memref<2x8x32xf32, #tpu.memory_space<vmem>>, vector<1x8x32xf32>
    %19 = vector.shape_cast %18 : vector<1x8x32xf32> to vector<8x32xf32>
    %c0_16 = arith.constant 0 : index
    %c0_17 = arith.constant 0 : index
    %20 = vector.load %arg5[%c0_16, %c0_17] : memref<32x128xbf16, #tpu.memory_space<vmem>>, vector<32x128xbf16>
    %c0_18 = arith.constant 0 : index
    %c0_19 = arith.constant 0 : index
    %21 = vector.load %arg6[%c0_18, %c0_19] : memref<32x128xbf16, #tpu.memory_space<vmem>>, vector<32x128xbf16>
    %c0_20 = arith.constant 0 : index
    %c0_21 = arith.constant 0 : index
    %22 = vector.load %arg7[%c0_20, %c0_21] : memref<32x128xbf16, #tpu.memory_space<vmem>>, vector<32x128xbf16>
    %c0_22 = arith.constant 0 : index
    %c0_23 = arith.constant 0 : index
    %23 = vector.load %arg8[%c0_22, %c0_23] : memref<1x128xf32, #tpu.memory_space<vmem>>, vector<1x128xf32>
    %c0_24 = arith.constant 0 : index
    %c0_25 = arith.constant 0 : index
    %24 = vector.load %arg9[%c0_24, %c0_25] : memref<32x128xbf16, #tpu.memory_space<vmem>>, vector<32x128xbf16>
    %c0_26 = arith.constant 0 : index
    %c0_27 = arith.constant 0 : index
    %25 = vector.load %arg10[%c0_26, %c0_27] : memref<1x128xf32, #tpu.memory_space<vmem>>, vector<1x128xf32>
    %c0_28 = arith.constant 0 : index
    %c0_29 = arith.constant 0 : index
    %26 = vector.load %arg11[%c0_28, %c0_29] : memref<32x128xbf16, #tpu.memory_space<vmem>>, vector<32x128xbf16>
    %c0_30 = arith.constant 0 : index
    %c0_31 = arith.constant 0 : index
    %27 = vector.load %arg12[%c0_30, %c0_31] : memref<32x128xbf16, #tpu.memory_space<vmem>>, vector<32x128xbf16>
    %c0_32 = arith.constant 0 : index
    %c0_33 = arith.constant 0 : index
    %28 = vector.load %arg13[%c0_32, %c0_33] : memref<32x128xbf16, #tpu.memory_space<vmem>>, vector<32x128xbf16>
    %c0_34 = arith.constant 0 : index
    %c0_35 = arith.constant 0 : index
    %29 = vector.load %arg14[%c0_34, %c0_35] : memref<1x128xf32, #tpu.memory_space<vmem>>, vector<1x128xf32>
    %30 = arith.truncf %17 : vector<8x32xf32> to vector<8x32xbf16>
    %cst_36 = arith.constant dense<0.000000e+00> : vector<8x128xf32>
    %31 = tpu.matmul %30, %22, %cst_36 {dimension_numbers = #tpu.dot_dimension_numbers<[1], [0], [0], [1], [0, 0, 1, 1], [], []>} : vector<8x32xbf16>, vector<32x128xbf16>, vector<8x128xf32> -> vector<8x128xf32>
    %32 = vector.broadcast %23 : vector<1x128xf32> to vector<8x128xf32>
    %33 = arith.addf %31, %32 : vector<8x128xf32>
    %34 = vector.extract_strided_slice %11 {offsets = [0, 0], sizes = [8, 128], strides = [1, 1]} : vector<32x128xf32> to vector<8x128xf32>
    %35 = arith.truncf %13 : vector<8x32xf32> to vector<8x32xbf16>
    %cst_37 = arith.constant dense<0.000000e+00> : vector<8x128xf32>
    %36 = tpu.matmul %35, %20, %cst_37 {dimension_numbers = #tpu.dot_dimension_numbers<[1], [0], [0], [1], [0, 0, 1, 1], [], []>} : vector<8x32xbf16>, vector<32x128xbf16>, vector<8x128xf32> -> vector<8x128xf32>
    %37 = arith.addf %34, %36 : vector<8x128xf32>
    %cst_38 = arith.constant 5.000000e-01 : f32
    %38 = vector.broadcast %cst_38 : f32 to vector<8x128xf32>
    %39 = arith.mulf %38, %37 : vector<8x128xf32>
    %40 = arith.select %5, %37, %39 : vector<8x128xi1>, vector<8x128xf32>
    %41 = math.tanh %40 : vector<8x128xf32>
    %cst_39 = arith.constant 5.000000e-01 : f32
    %42 = vector.broadcast %cst_39 : f32 to vector<8x128xf32>
    %43 = arith.mulf %42, %41 : vector<8x128xf32>
    %cst_40 = arith.constant 5.000000e-01 : f32
    %44 = vector.broadcast %cst_40 : f32 to vector<8x128xf32>
    %45 = arith.addf %43, %44 : vector<8x128xf32>
    %46 = arith.select %5, %41, %45 : vector<8x128xi1>, vector<8x128xf32>
    %47 = vector.extract_strided_slice %46 {offsets = [0, 0], sizes = [8, 32], strides = [1, 1]} : vector<8x128xf32> to vector<8x32xf32>
    %48 = vector.extract_strided_slice %46 {offsets = [0, 32], sizes = [8, 32], strides = [1, 1]} : vector<8x128xf32> to vector<8x32xf32>
    %49 = vector.extract_strided_slice %46 {offsets = [0, 64], sizes = [8, 32], strides = [1, 1]} : vector<8x128xf32> to vector<8x32xf32>
    %50 = vector.extract_strided_slice %46 {offsets = [0, 96], sizes = [8, 32], strides = [1, 1]} : vector<8x128xf32> to vector<8x32xf32>
    %51 = arith.mulf %48, %15 : vector<8x32xf32>
    %52 = arith.mulf %47, %49 : vector<8x32xf32>
    %53 = arith.addf %51, %52 : vector<8x32xf32>
    %54 = math.tanh %53 : vector<8x32xf32>
    %55 = arith.mulf %50, %54 : vector<8x32xf32>
    %56 = arith.truncf %55 : vector<8x32xf32> to vector<8x32xbf16>
    %cst_41 = arith.constant dense<0.000000e+00> : vector<8x128xf32>
    %57 = tpu.matmul %56, %21, %cst_41 {dimension_numbers = #tpu.dot_dimension_numbers<[1], [0], [0], [1], [0, 0, 1, 1], [], []>} : vector<8x32xbf16>, vector<32x128xbf16>, vector<8x128xf32> -> vector<8x128xf32>
    %58 = arith.addf %57, %33 : vector<8x128xf32>
    %cst_42 = arith.constant 5.000000e-01 : f32
    %59 = vector.broadcast %cst_42 : f32 to vector<8x128xf32>
    %60 = arith.mulf %59, %58 : vector<8x128xf32>
    %61 = arith.select %5, %58, %60 : vector<8x128xi1>, vector<8x128xf32>
    %62 = math.tanh %61 : vector<8x128xf32>
    %cst_43 = arith.constant 5.000000e-01 : f32
    %63 = vector.broadcast %cst_43 : f32 to vector<8x128xf32>
    %64 = arith.mulf %63, %62 : vector<8x128xf32>
    %cst_44 = arith.constant 5.000000e-01 : f32
    %65 = vector.broadcast %cst_44 : f32 to vector<8x128xf32>
    %66 = arith.addf %64, %65 : vector<8x128xf32>
    %67 = arith.select %5, %62, %66 : vector<8x128xi1>, vector<8x128xf32>
    %68 = vector.extract_strided_slice %67 {offsets = [0, 0], sizes = [8, 32], strides = [1, 1]} : vector<8x128xf32> to vector<8x32xf32>
    %69 = vector.extract_strided_slice %67 {offsets = [0, 32], sizes = [8, 32], strides = [1, 1]} : vector<8x128xf32> to vector<8x32xf32>
    %70 = vector.extract_strided_slice %67 {offsets = [0, 64], sizes = [8, 32], strides = [1, 1]} : vector<8x128xf32> to vector<8x32xf32>
    %71 = vector.extract_strided_slice %67 {offsets = [0, 96], sizes = [8, 32], strides = [1, 1]} : vector<8x128xf32> to vector<8x32xf32>
    %72 = arith.mulf %69, %19 : vector<8x32xf32>
    %73 = arith.mulf %68, %70 : vector<8x32xf32>
    %74 = arith.addf %72, %73 : vector<8x32xf32>
    %75 = math.tanh %74 : vector<8x32xf32>
    %76 = arith.mulf %71, %75 : vector<8x32xf32>
    %77 = arith.truncf %76 : vector<8x32xf32> to vector<8x32xbf16>
    %cst_45 = arith.constant dense<0.000000e+00> : vector<8x128xf32>
    %78 = tpu.matmul %77, %24, %cst_45 {dimension_numbers = #tpu.dot_dimension_numbers<[1], [0], [0], [1], [0, 0, 1, 1], [], []>} : vector<8x32xbf16>, vector<32x128xbf16>, vector<8x128xf32> -> vector<8x128xf32>
    %79 = vector.broadcast %25 : vector<1x128xf32> to vector<8x128xf32>
    %80 = arith.addf %78, %79 : vector<8x128xf32>
    %81 = arith.truncf %76 : vector<8x32xf32> to vector<8x32xbf16>
    %cst_46 = arith.constant dense<0.000000e+00> : vector<8x128xf32>
    %82 = tpu.matmul %81, %22, %cst_46 {dimension_numbers = #tpu.dot_dimension_numbers<[1], [0], [0], [1], [0, 0, 1, 1], [], []>} : vector<8x32xbf16>, vector<32x128xbf16>, vector<8x128xf32> -> vector<8x128xf32>
    %83 = vector.broadcast %23 : vector<1x128xf32> to vector<8x128xf32>
    %84 = arith.addf %82, %83 : vector<8x128xf32>
    %85 = vector.extract_strided_slice %11 {offsets = [8, 0], sizes = [8, 128], strides = [1, 1]} : vector<32x128xf32> to vector<8x128xf32>
    %86 = arith.truncf %55 : vector<8x32xf32> to vector<8x32xbf16>
    %cst_47 = arith.constant dense<0.000000e+00> : vector<8x128xf32>
    %87 = tpu.matmul %86, %20, %cst_47 {dimension_numbers = #tpu.dot_dimension_numbers<[1], [0], [0], [1], [0, 0, 1, 1], [], []>} : vector<8x32xbf16>, vector<32x128xbf16>, vector<8x128xf32> -> vector<8x128xf32>
    %88 = arith.addf %85, %87 : vector<8x128xf32>
    %cst_48 = arith.constant 5.000000e-01 : f32
    %89 = vector.broadcast %cst_48 : f32 to vector<8x128xf32>
    %90 = arith.mulf %89, %88 : vector<8x128xf32>
    %91 = arith.select %5, %88, %90 : vector<8x128xi1>, vector<8x128xf32>
    %92 = math.tanh %91 : vector<8x128xf32>
    %cst_49 = arith.constant 5.000000e-01 : f32
    %93 = vector.broadcast %cst_49 : f32 to vector<8x128xf32>
    %94 = arith.mulf %93, %92 : vector<8x128xf32>
    %cst_50 = arith.constant 5.000000e-01 : f32
    %95 = vector.broadcast %cst_50 : f32 to vector<8x128xf32>
    %96 = arith.addf %94, %95 : vector<8x128xf32>
    %97 = arith.select %5, %92, %96 : vector<8x128xi1>, vector<8x128xf32>
    %98 = vector.extract_strided_slice %97 {offsets = [0, 0], sizes = [8, 32], strides = [1, 1]} : vector<8x128xf32> to vector<8x32xf32>
    %99 = vector.extract_strided_slice %97 {offsets = [0, 32], sizes = [8, 32], strides = [1, 1]} : vector<8x128xf32> to vector<8x32xf32>
    %100 = vector.extract_strided_slice %97 {offsets = [0, 64], sizes = [8, 32], strides = [1, 1]} : vector<8x128xf32> to vector<8x32xf32>
    %101 = vector.extract_strided_slice %97 {offsets = [0, 96], sizes = [8, 32], strides = [1, 1]} : vector<8x128xf32> to vector<8x32xf32>
    %102 = arith.mulf %99, %53 : vector<8x32xf32>
    %103 = arith.mulf %98, %100 : vector<8x32xf32>
    %104 = arith.addf %102, %103 : vector<8x32xf32>
    %105 = math.tanh %104 : vector<8x32xf32>
    %106 = arith.mulf %101, %105 : vector<8x32xf32>
    %107 = arith.truncf %106 : vector<8x32xf32> to vector<8x32xbf16>
    %cst_51 = arith.constant dense<0.000000e+00> : vector<8x128xf32>
    %108 = tpu.matmul %107, %21, %cst_51 {dimension_numbers = #tpu.dot_dimension_numbers<[1], [0], [0], [1], [0, 0, 1, 1], [], []>} : vector<8x32xbf16>, vector<32x128xbf16>, vector<8x128xf32> -> vector<8x128xf32>
    %109 = arith.addf %108, %84 : vector<8x128xf32>
    %cst_52 = arith.constant 5.000000e-01 : f32
    %110 = vector.broadcast %cst_52 : f32 to vector<8x128xf32>
    %111 = arith.mulf %110, %109 : vector<8x128xf32>
    %112 = arith.select %5, %109, %111 : vector<8x128xi1>, vector<8x128xf32>
    %113 = math.tanh %112 : vector<8x128xf32>
    %cst_53 = arith.constant 5.000000e-01 : f32
    %114 = vector.broadcast %cst_53 : f32 to vector<8x128xf32>
    %115 = arith.mulf %114, %113 : vector<8x128xf32>
    %cst_54 = arith.constant 5.000000e-01 : f32
    %116 = vector.broadcast %cst_54 : f32 to vector<8x128xf32>
    %117 = arith.addf %115, %116 : vector<8x128xf32>
    %118 = arith.select %5, %113, %117 : vector<8x128xi1>, vector<8x128xf32>
    %119 = vector.extract_strided_slice %118 {offsets = [0, 0], sizes = [8, 32], strides = [1, 1]} : vector<8x128xf32> to vector<8x32xf32>
    %120 = vector.extract_strided_slice %118 {offsets = [0, 32], sizes = [8, 32], strides = [1, 1]} : vector<8x128xf32> to vector<8x32xf32>
    %121 = vector.extract_strided_slice %118 {offsets = [0, 64], sizes = [8, 32], strides = [1, 1]} : vector<8x128xf32> to vector<8x32xf32>
    %122 = vector.extract_strided_slice %118 {offsets = [0, 96], sizes = [8, 32], strides = [1, 1]} : vector<8x128xf32> to vector<8x32xf32>
    %123 = arith.mulf %120, %74 : vector<8x32xf32>
    %124 = arith.mulf %119, %121 : vector<8x32xf32>
    %125 = arith.addf %123, %124 : vector<8x32xf32>
    %126 = math.tanh %125 : vector<8x32xf32>
    %127 = arith.mulf %122, %126 : vector<8x32xf32>
    %128 = arith.truncf %127 : vector<8x32xf32> to vector<8x32xbf16>
    %cst_55 = arith.constant dense<0.000000e+00> : vector<8x128xf32>
    %129 = tpu.matmul %128, %24, %cst_55 {dimension_numbers = #tpu.dot_dimension_numbers<[1], [0], [0], [1], [0, 0, 1, 1], [], []>} : vector<8x32xbf16>, vector<32x128xbf16>, vector<8x128xf32> -> vector<8x128xf32>
    %130 = vector.broadcast %25 : vector<1x128xf32> to vector<8x128xf32>
    %131 = arith.addf %129, %130 : vector<8x128xf32>
    %132 = arith.truncf %127 : vector<8x32xf32> to vector<8x32xbf16>
    %cst_56 = arith.constant dense<0.000000e+00> : vector<8x128xf32>
    %133 = tpu.matmul %132, %22, %cst_56 {dimension_numbers = #tpu.dot_dimension_numbers<[1], [0], [0], [1], [0, 0, 1, 1], [], []>} : vector<8x32xbf16>, vector<32x128xbf16>, vector<8x128xf32> -> vector<8x128xf32>
    %134 = vector.broadcast %23 : vector<1x128xf32> to vector<8x128xf32>
    %135 = arith.addf %133, %134 : vector<8x128xf32>
    %136 = vector.extract_strided_slice %11 {offsets = [16, 0], sizes = [8, 128], strides = [1, 1]} : vector<32x128xf32> to vector<8x128xf32>
    %137 = arith.truncf %106 : vector<8x32xf32> to vector<8x32xbf16>
    %cst_57 = arith.constant dense<0.000000e+00> : vector<8x128xf32>
    %138 = tpu.matmul %137, %20, %cst_57 {dimension_numbers = #tpu.dot_dimension_numbers<[1], [0], [0], [1], [0, 0, 1, 1], [], []>} : vector<8x32xbf16>, vector<32x128xbf16>, vector<8x128xf32> -> vector<8x128xf32>
    %139 = arith.addf %136, %138 : vector<8x128xf32>
    %cst_58 = arith.constant 5.000000e-01 : f32
    %140 = vector.broadcast %cst_58 : f32 to vector<8x128xf32>
    %141 = arith.mulf %140, %139 : vector<8x128xf32>
    %142 = arith.select %5, %139, %141 : vector<8x128xi1>, vector<8x128xf32>
    %143 = math.tanh %142 : vector<8x128xf32>
    %cst_59 = arith.constant 5.000000e-01 : f32
    %144 = vector.broadcast %cst_59 : f32 to vector<8x128xf32>
    %145 = arith.mulf %144, %143 : vector<8x128xf32>
    %cst_60 = arith.constant 5.000000e-01 : f32
    %146 = vector.broadcast %cst_60 : f32 to vector<8x128xf32>
    %147 = arith.addf %145, %146 : vector<8x128xf32>
    %148 = arith.select %5, %143, %147 : vector<8x128xi1>, vector<8x128xf32>
    %149 = vector.extract_strided_slice %148 {offsets = [0, 0], sizes = [8, 32], strides = [1, 1]} : vector<8x128xf32> to vector<8x32xf32>
    %150 = vector.extract_strided_slice %148 {offsets = [0, 32], sizes = [8, 32], strides = [1, 1]} : vector<8x128xf32> to vector<8x32xf32>
    %151 = vector.extract_strided_slice %148 {offsets = [0, 64], sizes = [8, 32], strides = [1, 1]} : vector<8x128xf32> to vector<8x32xf32>
    %152 = vector.extract_strided_slice %148 {offsets = [0, 96], sizes = [8, 32], strides = [1, 1]} : vector<8x128xf32> to vector<8x32xf32>
    %153 = arith.mulf %150, %104 : vector<8x32xf32>
    %154 = arith.mulf %149, %151 : vector<8x32xf32>
    %155 = arith.addf %153, %154 : vector<8x32xf32>
    %156 = math.tanh %155 : vector<8x32xf32>
    %157 = arith.mulf %152, %156 : vector<8x32xf32>
    %158 = arith.truncf %157 : vector<8x32xf32> to vector<8x32xbf16>
    %cst_61 = arith.constant dense<0.000000e+00> : vector<8x128xf32>
    %159 = tpu.matmul %158, %21, %cst_61 {dimension_numbers = #tpu.dot_dimension_numbers<[1], [0], [0], [1], [0, 0, 1, 1], [], []>} : vector<8x32xbf16>, vector<32x128xbf16>, vector<8x128xf32> -> vector<8x128xf32>
    %160 = arith.addf %159, %135 : vector<8x128xf32>
    %cst_62 = arith.constant 5.000000e-01 : f32
    %161 = vector.broadcast %cst_62 : f32 to vector<8x128xf32>
    %162 = arith.mulf %161, %160 : vector<8x128xf32>
    %163 = arith.select %5, %160, %162 : vector<8x128xi1>, vector<8x128xf32>
    %164 = math.tanh %163 : vector<8x128xf32>
    %cst_63 = arith.constant 5.000000e-01 : f32
    %165 = vector.broadcast %cst_63 : f32 to vector<8x128xf32>
    %166 = arith.mulf %165, %164 : vector<8x128xf32>
    %cst_64 = arith.constant 5.000000e-01 : f32
    %167 = vector.broadcast %cst_64 : f32 to vector<8x128xf32>
    %168 = arith.addf %166, %167 : vector<8x128xf32>
    %169 = arith.select %5, %164, %168 : vector<8x128xi1>, vector<8x128xf32>
    %170 = vector.extract_strided_slice %169 {offsets = [0, 0], sizes = [8, 32], strides = [1, 1]} : vector<8x128xf32> to vector<8x32xf32>
    %171 = vector.extract_strided_slice %169 {offsets = [0, 32], sizes = [8, 32], strides = [1, 1]} : vector<8x128xf32> to vector<8x32xf32>
    %172 = vector.extract_strided_slice %169 {offsets = [0, 64], sizes = [8, 32], strides = [1, 1]} : vector<8x128xf32> to vector<8x32xf32>
    %173 = vector.extract_strided_slice %169 {offsets = [0, 96], sizes = [8, 32], strides = [1, 1]} : vector<8x128xf32> to vector<8x32xf32>
    %174 = arith.mulf %171, %125 : vector<8x32xf32>
    %175 = arith.mulf %170, %172 : vector<8x32xf32>
    %176 = arith.addf %174, %175 : vector<8x32xf32>
    %177 = math.tanh %176 : vector<8x32xf32>
    %178 = arith.mulf %173, %177 : vector<8x32xf32>
    %179 = arith.truncf %178 : vector<8x32xf32> to vector<8x32xbf16>
    %cst_65 = arith.constant dense<0.000000e+00> : vector<8x128xf32>
    %180 = tpu.matmul %179, %24, %cst_65 {dimension_numbers = #tpu.dot_dimension_numbers<[1], [0], [0], [1], [0, 0, 1, 1], [], []>} : vector<8x32xbf16>, vector<32x128xbf16>, vector<8x128xf32> -> vector<8x128xf32>
    %181 = vector.broadcast %25 : vector<1x128xf32> to vector<8x128xf32>
    %182 = arith.addf %180, %181 : vector<8x128xf32>
    %183 = arith.truncf %178 : vector<8x32xf32> to vector<8x32xbf16>
    %cst_66 = arith.constant dense<0.000000e+00> : vector<8x128xf32>
    %184 = tpu.matmul %183, %22, %cst_66 {dimension_numbers = #tpu.dot_dimension_numbers<[1], [0], [0], [1], [0, 0, 1, 1], [], []>} : vector<8x32xbf16>, vector<32x128xbf16>, vector<8x128xf32> -> vector<8x128xf32>
    %185 = vector.broadcast %23 : vector<1x128xf32> to vector<8x128xf32>
    %186 = arith.addf %184, %185 : vector<8x128xf32>
    %187 = vector.extract_strided_slice %11 {offsets = [24, 0], sizes = [8, 128], strides = [1, 1]} : vector<32x128xf32> to vector<8x128xf32>
    %188 = arith.truncf %157 : vector<8x32xf32> to vector<8x32xbf16>
    %cst_67 = arith.constant dense<0.000000e+00> : vector<8x128xf32>
    %189 = tpu.matmul %188, %20, %cst_67 {dimension_numbers = #tpu.dot_dimension_numbers<[1], [0], [0], [1], [0, 0, 1, 1], [], []>} : vector<8x32xbf16>, vector<32x128xbf16>, vector<8x128xf32> -> vector<8x128xf32>
    %190 = arith.addf %187, %189 : vector<8x128xf32>
    %cst_68 = arith.constant 5.000000e-01 : f32
    %191 = vector.broadcast %cst_68 : f32 to vector<8x128xf32>
    %192 = arith.mulf %191, %190 : vector<8x128xf32>
    %193 = arith.select %5, %190, %192 : vector<8x128xi1>, vector<8x128xf32>
    %194 = math.tanh %193 : vector<8x128xf32>
    %cst_69 = arith.constant 5.000000e-01 : f32
    %195 = vector.broadcast %cst_69 : f32 to vector<8x128xf32>
    %196 = arith.mulf %195, %194 : vector<8x128xf32>
    %cst_70 = arith.constant 5.000000e-01 : f32
    %197 = vector.broadcast %cst_70 : f32 to vector<8x128xf32>
    %198 = arith.addf %196, %197 : vector<8x128xf32>
    %199 = arith.select %5, %194, %198 : vector<8x128xi1>, vector<8x128xf32>
    %200 = vector.extract_strided_slice %199 {offsets = [0, 0], sizes = [8, 32], strides = [1, 1]} : vector<8x128xf32> to vector<8x32xf32>
    %201 = vector.extract_strided_slice %199 {offsets = [0, 32], sizes = [8, 32], strides = [1, 1]} : vector<8x128xf32> to vector<8x32xf32>
    %202 = vector.extract_strided_slice %199 {offsets = [0, 64], sizes = [8, 32], strides = [1, 1]} : vector<8x128xf32> to vector<8x32xf32>
    %203 = vector.extract_strided_slice %199 {offsets = [0, 96], sizes = [8, 32], strides = [1, 1]} : vector<8x128xf32> to vector<8x32xf32>
    %204 = arith.mulf %201, %155 : vector<8x32xf32>
    %205 = arith.mulf %200, %202 : vector<8x32xf32>
    %206 = arith.addf %204, %205 : vector<8x32xf32>
    %207 = math.tanh %206 : vector<8x32xf32>
    %208 = arith.mulf %203, %207 : vector<8x32xf32>
    %209 = arith.truncf %208 : vector<8x32xf32> to vector<8x32xbf16>
    %cst_71 = arith.constant dense<0.000000e+00> : vector<8x128xf32>
    %210 = tpu.matmul %209, %21, %cst_71 {dimension_numbers = #tpu.dot_dimension_numbers<[1], [0], [0], [1], [0, 0, 1, 1], [], []>} : vector<8x32xbf16>, vector<32x128xbf16>, vector<8x128xf32> -> vector<8x128xf32>
    %211 = arith.addf %210, %186 : vector<8x128xf32>
    %cst_72 = arith.constant 5.000000e-01 : f32
    %212 = vector.broadcast %cst_72 : f32 to vector<8x128xf32>
    %213 = arith.mulf %212, %211 : vector<8x128xf32>
    %214 = arith.select %5, %211, %213 : vector<8x128xi1>, vector<8x128xf32>
    %215 = math.tanh %214 : vector<8x128xf32>
    %cst_73 = arith.constant 5.000000e-01 : f32
    %216 = vector.broadcast %cst_73 : f32 to vector<8x128xf32>
    %217 = arith.mulf %216, %215 : vector<8x128xf32>
    %cst_74 = arith.constant 5.000000e-01 : f32
    %218 = vector.broadcast %cst_74 : f32 to vector<8x128xf32>
    %219 = arith.addf %217, %218 : vector<8x128xf32>
    %220 = arith.select %5, %215, %219 : vector<8x128xi1>, vector<8x128xf32>
    %221 = vector.extract_strided_slice %220 {offsets = [0, 0], sizes = [8, 32], strides = [1, 1]} : vector<8x128xf32> to vector<8x32xf32>
    %222 = vector.extract_strided_slice %220 {offsets = [0, 32], sizes = [8, 32], strides = [1, 1]} : vector<8x128xf32> to vector<8x32xf32>
    %223 = vector.extract_strided_slice %220 {offsets = [0, 64], sizes = [8, 32], strides = [1, 1]} : vector<8x128xf32> to vector<8x32xf32>
    %224 = vector.extract_strided_slice %220 {offsets = [0, 96], sizes = [8, 32], strides = [1, 1]} : vector<8x128xf32> to vector<8x32xf32>
    %225 = arith.mulf %222, %176 : vector<8x32xf32>
    %226 = arith.mulf %221, %223 : vector<8x32xf32>
    %227 = arith.addf %225, %226 : vector<8x32xf32>
    %228 = math.tanh %227 : vector<8x32xf32>
    %229 = arith.mulf %224, %228 : vector<8x32xf32>
    %230 = arith.truncf %229 : vector<8x32xf32> to vector<8x32xbf16>
    %cst_75 = arith.constant dense<0.000000e+00> : vector<8x128xf32>
    %231 = tpu.matmul %230, %24, %cst_75 {dimension_numbers = #tpu.dot_dimension_numbers<[1], [0], [0], [1], [0, 0, 1, 1], [], []>} : vector<8x32xbf16>, vector<32x128xbf16>, vector<8x128xf32> -> vector<8x128xf32>
    %232 = vector.broadcast %25 : vector<1x128xf32> to vector<8x128xf32>
    %233 = arith.addf %231, %232 : vector<8x128xf32>
    %234 = arith.truncf %229 : vector<8x32xf32> to vector<8x32xbf16>
    %cst_76 = arith.constant dense<0.000000e+00> : vector<8x128xf32>
    %235 = tpu.matmul %234, %28, %cst_76 {dimension_numbers = #tpu.dot_dimension_numbers<[1], [0], [0], [1], [0, 0, 1, 1], [], []>} : vector<8x32xbf16>, vector<32x128xbf16>, vector<8x128xf32> -> vector<8x128xf32>
    %236 = vector.broadcast %29 : vector<1x128xf32> to vector<8x128xf32>
    %237 = arith.addf %235, %236 : vector<8x128xf32>
    %238 = arith.truncf %208 : vector<8x32xf32> to vector<8x32xbf16>
    %cst_77 = arith.constant dense<0.000000e+00> : vector<8x128xf32>
    %239 = tpu.matmul %238, %26, %cst_77 {dimension_numbers = #tpu.dot_dimension_numbers<[1], [0], [0], [1], [0, 0, 1, 1], [], []>} : vector<8x32xbf16>, vector<32x128xbf16>, vector<8x128xf32> -> vector<8x128xf32>
    %240 = arith.addf %80, %239 : vector<8x128xf32>
    %cst_78 = arith.constant 5.000000e-01 : f32
    %241 = vector.broadcast %cst_78 : f32 to vector<8x128xf32>
    %242 = arith.mulf %241, %240 : vector<8x128xf32>
    %243 = arith.select %5, %240, %242 : vector<8x128xi1>, vector<8x128xf32>
    %244 = math.tanh %243 : vector<8x128xf32>
    %cst_79 = arith.constant 5.000000e-01 : f32
    %245 = vector.broadcast %cst_79 : f32 to vector<8x128xf32>
    %246 = arith.mulf %245, %244 : vector<8x128xf32>
    %cst_80 = arith.constant 5.000000e-01 : f32
    %247 = vector.broadcast %cst_80 : f32 to vector<8x128xf32>
    %248 = arith.addf %246, %247 : vector<8x128xf32>
    %249 = arith.select %5, %244, %248 : vector<8x128xi1>, vector<8x128xf32>
    %250 = vector.extract_strided_slice %249 {offsets = [0, 0], sizes = [8, 32], strides = [1, 1]} : vector<8x128xf32> to vector<8x32xf32>
    %251 = vector.extract_strided_slice %249 {offsets = [0, 32], sizes = [8, 32], strides = [1, 1]} : vector<8x128xf32> to vector<8x32xf32>
    %252 = vector.extract_strided_slice %249 {offsets = [0, 64], sizes = [8, 32], strides = [1, 1]} : vector<8x128xf32> to vector<8x32xf32>
    %253 = vector.extract_strided_slice %249 {offsets = [0, 96], sizes = [8, 32], strides = [1, 1]} : vector<8x128xf32> to vector<8x32xf32>
    %254 = arith.mulf %251, %206 : vector<8x32xf32>
    %255 = arith.mulf %250, %252 : vector<8x32xf32>
    %256 = arith.addf %254, %255 : vector<8x32xf32>
    %257 = math.tanh %256 : vector<8x32xf32>
    %258 = arith.mulf %253, %257 : vector<8x32xf32>
    %259 = arith.truncf %258 : vector<8x32xf32> to vector<8x32xbf16>
    %cst_81 = arith.constant dense<0.000000e+00> : vector<8x128xf32>
    %260 = tpu.matmul %259, %27, %cst_81 {dimension_numbers = #tpu.dot_dimension_numbers<[1], [0], [0], [1], [0, 0, 1, 1], [], []>} : vector<8x32xbf16>, vector<32x128xbf16>, vector<8x128xf32> -> vector<8x128xf32>
    %261 = arith.addf %260, %237 : vector<8x128xf32>
    %cst_82 = arith.constant 5.000000e-01 : f32
    %262 = vector.broadcast %cst_82 : f32 to vector<8x128xf32>
    %263 = arith.mulf %262, %261 : vector<8x128xf32>
    %264 = arith.select %5, %261, %263 : vector<8x128xi1>, vector<8x128xf32>
    %265 = math.tanh %264 : vector<8x128xf32>
    %cst_83 = arith.constant 5.000000e-01 : f32
    %266 = vector.broadcast %cst_83 : f32 to vector<8x128xf32>
    %267 = arith.mulf %266, %265 : vector<8x128xf32>
    %cst_84 = arith.constant 5.000000e-01 : f32
    %268 = vector.broadcast %cst_84 : f32 to vector<8x128xf32>
    %269 = arith.addf %267, %268 : vector<8x128xf32>
    %270 = arith.select %5, %265, %269 : vector<8x128xi1>, vector<8x128xf32>
    %271 = vector.extract_strided_slice %270 {offsets = [0, 0], sizes = [8, 32], strides = [1, 1]} : vector<8x128xf32> to vector<8x32xf32>
    %272 = vector.extract_strided_slice %270 {offsets = [0, 32], sizes = [8, 32], strides = [1, 1]} : vector<8x128xf32> to vector<8x32xf32>
    %273 = vector.extract_strided_slice %270 {offsets = [0, 64], sizes = [8, 32], strides = [1, 1]} : vector<8x128xf32> to vector<8x32xf32>
    %274 = vector.extract_strided_slice %270 {offsets = [0, 96], sizes = [8, 32], strides = [1, 1]} : vector<8x128xf32> to vector<8x32xf32>
    %275 = arith.mulf %272, %227 : vector<8x32xf32>
    %276 = arith.mulf %271, %273 : vector<8x32xf32>
    %277 = arith.addf %275, %276 : vector<8x32xf32>
    %278 = math.tanh %277 : vector<8x32xf32>
    %279 = arith.mulf %274, %278 : vector<8x32xf32>
    %280 = arith.truncf %279 : vector<8x32xf32> to vector<8x32xbf16>
    %cst_85 = arith.constant dense<0.000000e+00> : vector<8x128xf32>
    %281 = tpu.matmul %280, %28, %cst_85 {dimension_numbers = #tpu.dot_dimension_numbers<[1], [0], [0], [1], [0, 0, 1, 1], [], []>} : vector<8x32xbf16>, vector<32x128xbf16>, vector<8x128xf32> -> vector<8x128xf32>
    %282 = vector.broadcast %29 : vector<1x128xf32> to vector<8x128xf32>
    %283 = arith.addf %281, %282 : vector<8x128xf32>
    %284 = arith.truncf %258 : vector<8x32xf32> to vector<8x32xbf16>
    %cst_86 = arith.constant dense<0.000000e+00> : vector<8x128xf32>
    %285 = tpu.matmul %284, %26, %cst_86 {dimension_numbers = #tpu.dot_dimension_numbers<[1], [0], [0], [1], [0, 0, 1, 1], [], []>} : vector<8x32xbf16>, vector<32x128xbf16>, vector<8x128xf32> -> vector<8x128xf32>
    %286 = arith.addf %131, %285 : vector<8x128xf32>
    %cst_87 = arith.constant 5.000000e-01 : f32
    %287 = vector.broadcast %cst_87 : f32 to vector<8x128xf32>
    %288 = arith.mulf %287, %286 : vector<8x128xf32>
    %289 = arith.select %5, %286, %288 : vector<8x128xi1>, vector<8x128xf32>
    %290 = math.tanh %289 : vector<8x128xf32>
    %cst_88 = arith.constant 5.000000e-01 : f32
    %291 = vector.broadcast %cst_88 : f32 to vector<8x128xf32>
    %292 = arith.mulf %291, %290 : vector<8x128xf32>
    %cst_89 = arith.constant 5.000000e-01 : f32
    %293 = vector.broadcast %cst_89 : f32 to vector<8x128xf32>
    %294 = arith.addf %292, %293 : vector<8x128xf32>
    %295 = arith.select %5, %290, %294 : vector<8x128xi1>, vector<8x128xf32>
    %296 = vector.extract_strided_slice %295 {offsets = [0, 0], sizes = [8, 32], strides = [1, 1]} : vector<8x128xf32> to vector<8x32xf32>
    %297 = vector.extract_strided_slice %295 {offsets = [0, 32], sizes = [8, 32], strides = [1, 1]} : vector<8x128xf32> to vector<8x32xf32>
    %298 = vector.extract_strided_slice %295 {offsets = [0, 64], sizes = [8, 32], strides = [1, 1]} : vector<8x128xf32> to vector<8x32xf32>
    %299 = vector.extract_strided_slice %295 {offsets = [0, 96], sizes = [8, 32], strides = [1, 1]} : vector<8x128xf32> to vector<8x32xf32>
    %300 = arith.mulf %297, %256 : vector<8x32xf32>
    %301 = arith.mulf %296, %298 : vector<8x32xf32>
    %302 = arith.addf %300, %301 : vector<8x32xf32>
    %303 = math.tanh %302 : vector<8x32xf32>
    %304 = arith.mulf %299, %303 : vector<8x32xf32>
    %305 = arith.truncf %304 : vector<8x32xf32> to vector<8x32xbf16>
    %cst_90 = arith.constant dense<0.000000e+00> : vector<8x128xf32>
    %306 = tpu.matmul %305, %27, %cst_90 {dimension_numbers = #tpu.dot_dimension_numbers<[1], [0], [0], [1], [0, 0, 1, 1], [], []>} : vector<8x32xbf16>, vector<32x128xbf16>, vector<8x128xf32> -> vector<8x128xf32>
    %307 = arith.addf %306, %283 : vector<8x128xf32>
    %cst_91 = arith.constant 5.000000e-01 : f32
    %308 = vector.broadcast %cst_91 : f32 to vector<8x128xf32>
    %309 = arith.mulf %308, %307 : vector<8x128xf32>
    %310 = arith.select %5, %307, %309 : vector<8x128xi1>, vector<8x128xf32>
    %311 = math.tanh %310 : vector<8x128xf32>
    %cst_92 = arith.constant 5.000000e-01 : f32
    %312 = vector.broadcast %cst_92 : f32 to vector<8x128xf32>
    %313 = arith.mulf %312, %311 : vector<8x128xf32>
    %cst_93 = arith.constant 5.000000e-01 : f32
    %314 = vector.broadcast %cst_93 : f32 to vector<8x128xf32>
    %315 = arith.addf %313, %314 : vector<8x128xf32>
    %316 = arith.select %5, %311, %315 : vector<8x128xi1>, vector<8x128xf32>
    %317 = vector.extract_strided_slice %316 {offsets = [0, 0], sizes = [8, 32], strides = [1, 1]} : vector<8x128xf32> to vector<8x32xf32>
    %318 = vector.extract_strided_slice %316 {offsets = [0, 32], sizes = [8, 32], strides = [1, 1]} : vector<8x128xf32> to vector<8x32xf32>
    %319 = vector.extract_strided_slice %316 {offsets = [0, 64], sizes = [8, 32], strides = [1, 1]} : vector<8x128xf32> to vector<8x32xf32>
    %320 = vector.extract_strided_slice %316 {offsets = [0, 96], sizes = [8, 32], strides = [1, 1]} : vector<8x128xf32> to vector<8x32xf32>
    %321 = arith.mulf %318, %277 : vector<8x32xf32>
    %322 = arith.mulf %317, %319 : vector<8x32xf32>
    %323 = arith.addf %321, %322 : vector<8x32xf32>
    %324 = math.tanh %323 : vector<8x32xf32>
    %325 = arith.mulf %320, %324 : vector<8x32xf32>
    %326 = arith.truncf %325 : vector<8x32xf32> to vector<8x32xbf16>
    %cst_94 = arith.constant dense<0.000000e+00> : vector<8x128xf32>
    %327 = tpu.matmul %326, %28, %cst_94 {dimension_numbers = #tpu.dot_dimension_numbers<[1], [0], [0], [1], [0, 0, 1, 1], [], []>} : vector<8x32xbf16>, vector<32x128xbf16>, vector<8x128xf32> -> vector<8x128xf32>
    %328 = vector.broadcast %29 : vector<1x128xf32> to vector<8x128xf32>
    %329 = arith.addf %327, %328 : vector<8x128xf32>
    %330 = arith.truncf %304 : vector<8x32xf32> to vector<8x32xbf16>
    %cst_95 = arith.constant dense<0.000000e+00> : vector<8x128xf32>
    %331 = tpu.matmul %330, %26, %cst_95 {dimension_numbers = #tpu.dot_dimension_numbers<[1], [0], [0], [1], [0, 0, 1, 1], [], []>} : vector<8x32xbf16>, vector<32x128xbf16>, vector<8x128xf32> -> vector<8x128xf32>
    %332 = arith.addf %182, %331 : vector<8x128xf32>
    %cst_96 = arith.constant 5.000000e-01 : f32
    %333 = vector.broadcast %cst_96 : f32 to vector<8x128xf32>
    %334 = arith.mulf %333, %332 : vector<8x128xf32>
    %335 = arith.select %5, %332, %334 : vector<8x128xi1>, vector<8x128xf32>
    %336 = math.tanh %335 : vector<8x128xf32>
    %cst_97 = arith.constant 5.000000e-01 : f32
    %337 = vector.broadcast %cst_97 : f32 to vector<8x128xf32>
    %338 = arith.mulf %337, %336 : vector<8x128xf32>
    %cst_98 = arith.constant 5.000000e-01 : f32
    %339 = vector.broadcast %cst_98 : f32 to vector<8x128xf32>
    %340 = arith.addf %338, %339 : vector<8x128xf32>
    %341 = arith.select %5, %336, %340 : vector<8x128xi1>, vector<8x128xf32>
    %342 = vector.extract_strided_slice %341 {offsets = [0, 0], sizes = [8, 32], strides = [1, 1]} : vector<8x128xf32> to vector<8x32xf32>
    %343 = vector.extract_strided_slice %341 {offsets = [0, 32], sizes = [8, 32], strides = [1, 1]} : vector<8x128xf32> to vector<8x32xf32>
    %344 = vector.extract_strided_slice %341 {offsets = [0, 64], sizes = [8, 32], strides = [1, 1]} : vector<8x128xf32> to vector<8x32xf32>
    %345 = vector.extract_strided_slice %341 {offsets = [0, 96], sizes = [8, 32], strides = [1, 1]} : vector<8x128xf32> to vector<8x32xf32>
    %346 = arith.mulf %343, %302 : vector<8x32xf32>
    %347 = arith.mulf %342, %344 : vector<8x32xf32>
    %348 = arith.addf %346, %347 : vector<8x32xf32>
    %349 = math.tanh %348 : vector<8x32xf32>
    %350 = arith.mulf %345, %349 : vector<8x32xf32>
    %351 = arith.truncf %350 : vector<8x32xf32> to vector<8x32xbf16>
    %cst_99 = arith.constant dense<0.000000e+00> : vector<8x128xf32>
    %352 = tpu.matmul %351, %27, %cst_99 {dimension_numbers = #tpu.dot_dimension_numbers<[1], [0], [0], [1], [0, 0, 1, 1], [], []>} : vector<8x32xbf16>, vector<32x128xbf16>, vector<8x128xf32> -> vector<8x128xf32>
    %353 = arith.addf %352, %329 : vector<8x128xf32>
    %cst_100 = arith.constant 5.000000e-01 : f32
    %354 = vector.broadcast %cst_100 : f32 to vector<8x128xf32>
    %355 = arith.mulf %354, %353 : vector<8x128xf32>
    %356 = arith.select %5, %353, %355 : vector<8x128xi1>, vector<8x128xf32>
    %357 = math.tanh %356 : vector<8x128xf32>
    %cst_101 = arith.constant 5.000000e-01 : f32
    %358 = vector.broadcast %cst_101 : f32 to vector<8x128xf32>
    %359 = arith.mulf %358, %357 : vector<8x128xf32>
    %cst_102 = arith.constant 5.000000e-01 : f32
    %360 = vector.broadcast %cst_102 : f32 to vector<8x128xf32>
    %361 = arith.addf %359, %360 : vector<8x128xf32>
    %362 = arith.select %5, %357, %361 : vector<8x128xi1>, vector<8x128xf32>
    %363 = vector.extract_strided_slice %362 {offsets = [0, 0], sizes = [8, 32], strides = [1, 1]} : vector<8x128xf32> to vector<8x32xf32>
    %364 = vector.extract_strided_slice %362 {offsets = [0, 32], sizes = [8, 32], strides = [1, 1]} : vector<8x128xf32> to vector<8x32xf32>
    %365 = vector.extract_strided_slice %362 {offsets = [0, 64], sizes = [8, 32], strides = [1, 1]} : vector<8x128xf32> to vector<8x32xf32>
    %366 = vector.extract_strided_slice %362 {offsets = [0, 96], sizes = [8, 32], strides = [1, 1]} : vector<8x128xf32> to vector<8x32xf32>
    %367 = arith.mulf %364, %323 : vector<8x32xf32>
    %368 = arith.mulf %363, %365 : vector<8x32xf32>
    %369 = arith.addf %367, %368 : vector<8x32xf32>
    %370 = math.tanh %369 : vector<8x32xf32>
    %371 = arith.mulf %366, %370 : vector<8x32xf32>
    %372 = arith.truncf %371 : vector<8x32xf32> to vector<8x32xbf16>
    %cst_103 = arith.constant dense<0.000000e+00> : vector<8x128xf32>
    %373 = tpu.matmul %372, %28, %cst_103 {dimension_numbers = #tpu.dot_dimension_numbers<[1], [0], [0], [1], [0, 0, 1, 1], [], []>} : vector<8x32xbf16>, vector<32x128xbf16>, vector<8x128xf32> -> vector<8x128xf32>
    %374 = vector.broadcast %29 : vector<1x128xf32> to vector<8x128xf32>
    %375 = arith.addf %373, %374 : vector<8x128xf32>
    %376 = arith.truncf %350 : vector<8x32xf32> to vector<8x32xbf16>
    %cst_104 = arith.constant dense<0.000000e+00> : vector<8x128xf32>
    %377 = tpu.matmul %376, %26, %cst_104 {dimension_numbers = #tpu.dot_dimension_numbers<[1], [0], [0], [1], [0, 0, 1, 1], [], []>} : vector<8x32xbf16>, vector<32x128xbf16>, vector<8x128xf32> -> vector<8x128xf32>
    %378 = arith.addf %233, %377 : vector<8x128xf32>
    %cst_105 = arith.constant 5.000000e-01 : f32
    %379 = vector.broadcast %cst_105 : f32 to vector<8x128xf32>
    %380 = arith.mulf %379, %378 : vector<8x128xf32>
    %381 = arith.select %5, %378, %380 : vector<8x128xi1>, vector<8x128xf32>
    %382 = math.tanh %381 : vector<8x128xf32>
    %cst_106 = arith.constant 5.000000e-01 : f32
    %383 = vector.broadcast %cst_106 : f32 to vector<8x128xf32>
    %384 = arith.mulf %383, %382 : vector<8x128xf32>
    %cst_107 = arith.constant 5.000000e-01 : f32
    %385 = vector.broadcast %cst_107 : f32 to vector<8x128xf32>
    %386 = arith.addf %384, %385 : vector<8x128xf32>
    %387 = arith.select %5, %382, %386 : vector<8x128xi1>, vector<8x128xf32>
    %388 = vector.extract_strided_slice %387 {offsets = [0, 0], sizes = [8, 32], strides = [1, 1]} : vector<8x128xf32> to vector<8x32xf32>
    %389 = vector.extract_strided_slice %387 {offsets = [0, 32], sizes = [8, 32], strides = [1, 1]} : vector<8x128xf32> to vector<8x32xf32>
    %390 = vector.extract_strided_slice %387 {offsets = [0, 64], sizes = [8, 32], strides = [1, 1]} : vector<8x128xf32> to vector<8x32xf32>
    %391 = vector.extract_strided_slice %387 {offsets = [0, 96], sizes = [8, 32], strides = [1, 1]} : vector<8x128xf32> to vector<8x32xf32>
    %392 = arith.mulf %389, %348 : vector<8x32xf32>
    %393 = arith.mulf %388, %390 : vector<8x32xf32>
    %394 = arith.addf %392, %393 : vector<8x32xf32>
    %395 = math.tanh %394 : vector<8x32xf32>
    %396 = arith.mulf %391, %395 : vector<8x32xf32>
    %397 = arith.truncf %396 : vector<8x32xf32> to vector<8x32xbf16>
    %cst_108 = arith.constant dense<0.000000e+00> : vector<8x128xf32>
    %398 = tpu.matmul %397, %27, %cst_108 {dimension_numbers = #tpu.dot_dimension_numbers<[1], [0], [0], [1], [0, 0, 1, 1], [], []>} : vector<8x32xbf16>, vector<32x128xbf16>, vector<8x128xf32> -> vector<8x128xf32>
    %399 = arith.addf %398, %375 : vector<8x128xf32>
    %cst_109 = arith.constant 5.000000e-01 : f32
    %400 = vector.broadcast %cst_109 : f32 to vector<8x128xf32>
    %401 = arith.mulf %400, %399 : vector<8x128xf32>
    %402 = arith.select %5, %399, %401 : vector<8x128xi1>, vector<8x128xf32>
    %403 = math.tanh %402 : vector<8x128xf32>
    %cst_110 = arith.constant 5.000000e-01 : f32
    %404 = vector.broadcast %cst_110 : f32 to vector<8x128xf32>
    %405 = arith.mulf %404, %403 : vector<8x128xf32>
    %cst_111 = arith.constant 5.000000e-01 : f32
    %406 = vector.broadcast %cst_111 : f32 to vector<8x128xf32>
    %407 = arith.addf %405, %406 : vector<8x128xf32>
    %408 = arith.select %5, %403, %407 : vector<8x128xi1>, vector<8x128xf32>
    %409 = vector.extract_strided_slice %408 {offsets = [0, 0], sizes = [8, 32], strides = [1, 1]} : vector<8x128xf32> to vector<8x32xf32>
    %410 = vector.extract_strided_slice %408 {offsets = [0, 32], sizes = [8, 32], strides = [1, 1]} : vector<8x128xf32> to vector<8x32xf32>
    %411 = vector.extract_strided_slice %408 {offsets = [0, 64], sizes = [8, 32], strides = [1, 1]} : vector<8x128xf32> to vector<8x32xf32>
    %412 = vector.extract_strided_slice %408 {offsets = [0, 96], sizes = [8, 32], strides = [1, 1]} : vector<8x128xf32> to vector<8x32xf32>
    %413 = arith.mulf %410, %369 : vector<8x32xf32>
    %414 = arith.mulf %409, %411 : vector<8x32xf32>
    %415 = arith.addf %413, %414 : vector<8x32xf32>
    %416 = math.tanh %415 : vector<8x32xf32>
    %417 = arith.mulf %412, %416 : vector<8x32xf32>
    %c0_112 = arith.constant 0 : index
    %c0_113 = arith.constant 0 : index
    %418 = vector.load %arg15[%c0_112, %c0_113] : memref<32x128xbf16, #tpu.memory_space<vmem>>, vector<32x128xbf16>
    %419 = arith.truncf %417 : vector<8x32xf32> to vector<8x32xbf16>
    %cst_114 = arith.constant dense<0.000000e+00> : vector<8x128xf32>
    %420 = tpu.matmul %419, %418, %cst_114 {dimension_numbers = #tpu.dot_dimension_numbers<[1], [0], [0], [1], [0, 0, 1, 1], [], []>} : vector<8x32xbf16>, vector<32x128xbf16>, vector<8x128xf32> -> vector<8x128xf32>
    %c0_115 = arith.constant 0 : index
    %c0_116 = arith.constant 0 : index
    %421 = vector.load %arg16[%c0_115, %c0_116] : memref<1x128xf32, #tpu.memory_space<vmem>>, vector<1x128xf32>
    %422 = vector.broadcast %421 : vector<1x128xf32> to vector<8x128xf32>
    %423 = arith.addf %420, %422 : vector<8x128xf32>
    %c0_117 = arith.constant 0 : index
    %c0_118 = arith.constant 0 : index
    %424 = vector.load %arg17[%c0_117, %c0_118] : memref<8x128xf32, #tpu.memory_space<vmem>>, vector<8x128xf32>
    tpu.vector_store %arg17[%c0_117, %c0_118], %423 {strides = array<i32>} : memref<8x128xf32, #tpu.memory_space<vmem>>, vector<8x128xf32>,
    return
  }
}

</mosaic_0001>

<llo_original>
// kernel: recurrency_block.1
$region0: #{recurrency_block.1}
  #allocation0 [shape = 'u32[]', space=smem, size = 0x4, offset = 0x4, fixed_abs, tag = 'smem constant byte address 0x4 - core index']
  #allocation1 [shape = 'u32[144,128]{1,0:T(1,128)}', space=vmem, size = 0x12000, scoped, tag = 'internal scratch']
  %s0 = inlined_call_operand.vmem [shape: bf16[32,512], index: 0, kind: input, shape index: {}]
  %s1 = inlined_call_operand.vmem [shape: f32[2,8,32], index: 1, kind: input, shape index: {}]
  %s2 = inlined_call_operand.vmem [shape: f32[2,8,32], index: 2, kind: input, shape index: {}]
  %s3 = inlined_call_operand.hbm [shape: bf16[512,128], index: 3, kind: input, shape index: {}]
  %s4 = inlined_call_operand.vmem [shape: f32[1,128], index: 4, kind: input, shape index: {}]
  %s5 = inlined_call_operand.vmem [shape: bf16[32,128], index: 5, kind: input, shape index: {}]
  %s6 = inlined_call_operand.vmem [shape: bf16[32,128], index: 6, kind: input, shape index: {}]
  %s7 = inlined_call_operand.vmem [shape: bf16[32,128], index: 7, kind: input, shape index: {}]
  %s8 = inlined_call_operand.vmem [shape: f32[1,128], index: 8, kind: input, shape index: {}]
  %s9 = inlined_call_operand.vmem [shape: bf16[32,128], index: 9, kind: input, shape index: {}]
  %s10 = inlined_call_operand.vmem [shape: f32[1,128], index: 10, kind: input, shape index: {}]
  %s11 = inlined_call_operand.vmem [shape: bf16[32,128], index: 11, kind: input, shape index: {}]
  %s12 = inlined_call_operand.vmem [shape: bf16[32,128], index: 12, kind: input, shape index: {}]
  %s13 = inlined_call_operand.vmem [shape: bf16[32,128], index: 13, kind: input, shape index: {}]
  %s14 = inlined_call_operand.vmem [shape: f32[1,128], index: 14, kind: input, shape index: {}]
  %s15 = inlined_call_operand.vmem [shape: bf16[32,128], index: 15, kind: input, shape index: {}]
  %s16 = inlined_call_operand.vmem [shape: f32[1,128], index: 16, kind: input, shape index: {}]
  %s17 = inlined_call_operand.vmem [shape: f32[8,128], index: 17, kind: output, shape index: {}]
  %s18 = sld [smem:[#allocation0]]
  $region82: #{recurrency_block.1} parent=0
    _
  %s20 = ssub.s32 1, %s18
  %s21 = scalar_select 0, %s20, %s18
  $region1: #{recurrency_block.1} parent=0
    #allocation2 [shape = 'u8[131072]{0}', space=vmem, size = 0x20000, scoped, tag = 'input window, operand 3, single buffered']
    #allocation3 [shape = 's32[1]{0}', space=sflag, size = 0x4, scoped, tag = 'scoped memory for recurrency_block.1']
    %22 = vsyncpa [#allocation3], 0
    // Predicated region
    $region2: #{recurrency_block.1} parent=1 // pred_check
      _
    $region3: #{recurrency_block.1} parent=1 // pred_check_branch
      %24 = sbr.rel (0) target = $region5
    $region4: #{recurrency_block.1} parent=1 // pred_region
      _
    $region5: #{recurrency_block.1} parent=1 // pred_fallthru
      _
    // Predicated region
    $region6: #{recurrency_block.1} parent=1 // pred_check
      _
    $region7: #{recurrency_block.1} parent=1 // pred_check_branch
      %26 = sbr.rel (0) target = $region9
    $region8: #{recurrency_block.1} parent=1 // pred_region
      _
    $region9: #{recurrency_block.1} parent=1 // pred_fallthru
      _
    // Predicated region
    $region10: #{recurrency_block.1} parent=1 // pred_check
      _
    $region11: #{recurrency_block.1} parent=1 // pred_check_branch
      %28 = sbr.rel (0) target = $region13
    $region12: #{recurrency_block.1} parent=1 // pred_region
      _
    $region13: #{recurrency_block.1} parent=1 // pred_fallthru
      _
    // Predicated region
    $region14: #{recurrency_block.1} parent=1 // pred_check
      _
    $region15: #{recurrency_block.1} parent=1 // pred_check_branch
      %30 = sbr.rel (0) target = $region17
    $region16: #{recurrency_block.1} parent=1 // pred_region
      %s32 = ssub.s32 4096, 4096
      %33 = vsyncadd [#allocation3], %s32
      %s34 = sshll.u32 [#allocation2], 4
      %s35 = int_to_ptr.vmem [resolvable:$true] %s34
      %40 = dma.hbm_to_vmem [thread:$0]  %s3, 4096, %s35, [#allocation3], 64, 64, 4
    $region17: #{recurrency_block.1} parent=1 // pred_fallthru
      _
    // Predicated region
    $region18: #{recurrency_block.1} parent=1 // pred_check
      _
    $region19: #{recurrency_block.1} parent=1 // pred_check_branch
      %42 = sbr.rel (0) target = $region21
    $region20: #{recurrency_block.1} parent=1 // pred_region
      _
    $region21: #{recurrency_block.1} parent=1 // pred_fallthru
      _
    // Predicated region
    $region22: #{recurrency_block.1} parent=1 // pred_check
      _
    $region23: #{recurrency_block.1} parent=1 // pred_check_branch
      %44 = sbr.rel (0) target = $region25
    $region24: #{recurrency_block.1} parent=1 // pred_region
      _
    $region25: #{recurrency_block.1} parent=1 // pred_fallthru
      _
    // Predicated region
    $region26: #{recurrency_block.1} parent=1 // pred_check
      _
    $region27: #{recurrency_block.1} parent=1 // pred_check_branch
      %46 = sbr.rel (0) target = $region29
    $region28: #{recurrency_block.1} parent=1 // pred_region
      _
    $region29: #{recurrency_block.1} parent=1 // pred_fallthru
      _
    // Predicated region
    $region30: #{recurrency_block.1} parent=1 // pred_check
      _
    $region31: #{recurrency_block.1} parent=1 // pred_check_branch
      %48 = sbr.rel (0) target = $region33
    $region32: #{recurrency_block.1} parent=1 // pred_region
      _
    $region33: #{recurrency_block.1} parent=1 // pred_fallthru
      _
    // Predicated region
    $region34: #{recurrency_block.1} parent=1 // pred_check
      _
    $region35: #{recurrency_block.1} parent=1 // pred_check_branch
      %50 = sbr.rel (0) target = $region37
    $region36: #{recurrency_block.1} parent=1 // pred_region
      _
    $region37: #{recurrency_block.1} parent=1 // pred_fallthru
      _
    // Predicated region
    $region38: #{recurrency_block.1} parent=1 // pred_check
      _
    $region39: #{recurrency_block.1} parent=1 // pred_check_branch
      %52 = sbr.rel (0) target = $region41
    $region40: #{recurrency_block.1} parent=1 // pred_region
      _
    $region41: #{recurrency_block.1} parent=1 // pred_fallthru
      _
    // Predicated region
    $region42: #{recurrency_block.1} parent=1 // pred_check
      _
    $region43: #{recurrency_block.1} parent=1 // pred_check_branch
      %54 = sbr.rel (0) target = $region45
    $region44: #{recurrency_block.1} parent=1 // pred_region
      _
    $region45: #{recurrency_block.1} parent=1 // pred_fallthru
      _
    // Predicated region
    $region46: #{recurrency_block.1} parent=1 // pred_check
      _
    $region47: #{recurrency_block.1} parent=1 // pred_check_branch
      %56 = sbr.rel (0) target = $region49
    $region48: #{recurrency_block.1} parent=1 // pred_region
      _
    $region49: #{recurrency_block.1} parent=1 // pred_fallthru
      _
    // Predicated region
    $region50: #{recurrency_block.1} parent=1 // pred_check
      _
    $region51: #{recurrency_block.1} parent=1 // pred_check_branch
      %58 = sbr.rel (0) target = $region53
    $region52: #{recurrency_block.1} parent=1 // pred_region
      _
    $region53: #{recurrency_block.1} parent=1 // pred_fallthru
      _
    // Predicated region
    $region54: #{recurrency_block.1} parent=1 // pred_check
      _
    $region55: #{recurrency_block.1} parent=1 // pred_check_branch
      %60 = sbr.rel (0) target = $region57
    $region56: #{recurrency_block.1} parent=1 // pred_region
      _
    $region57: #{recurrency_block.1} parent=1 // pred_fallthru
      _
    // Predicated region
    $region58: #{recurrency_block.1} parent=1 // pred_check
      _
    $region59: #{recurrency_block.1} parent=1 // pred_check_branch
      %62 = sbr.rel (0) target = $region61
    $region60: #{recurrency_block.1} parent=1 // pred_region
      _
    $region61: #{recurrency_block.1} parent=1 // pred_fallthru
      _
    // Predicated region
    $region62: #{recurrency_block.1} parent=1 // pred_check
      _
    $region63: #{recurrency_block.1} parent=1 // pred_check_branch
      %64 = sbr.rel (0) target = $region65
    $region64: #{recurrency_block.1} parent=1 // pred_region
      _
    $region65: #{recurrency_block.1} parent=1 // pred_fallthru
      _
    // Predicated region
    $region66: #{recurrency_block.1} parent=1 // pred_check
      _
    $region67: #{recurrency_block.1} parent=1 // pred_check_branch
      %66 = sbr.rel (0) target = $region69
    $region68: #{recurrency_block.1} parent=1 // pred_region
      _
    $region69: #{recurrency_block.1} parent=1 // pred_fallthru
      _
    // Predicated region
    $region70: #{recurrency_block.1} parent=1 // pred_check
      _
    $region71: #{recurrency_block.1} parent=1 // pred_check_branch
      %68 = sbr.rel (0) target = $region73
    $region72: #{recurrency_block.1} parent=1 // pred_region
      %69 = dma.done [#allocation3], 4096
    $region73: #{recurrency_block.1} parent=1 // pred_fallthru
      _
    %v71 = vlaneseq
    %v72 = vand.u32 %v71, 127
    %vm73 = vcmp.ge.s32.totalorder %v72, 64
    %vm74 = vcmp.lt.s32.totalorder %v72, 96
    %vm75 = vmand %vm73, %vm74
    %v76 = vld [vmem:[%s0] sm:$0xff]
    %v77 = vld [vmem:[%s0 + $0x8] sm:$0xff]
    %v78 = vld [vmem:[%s0 + $0x10] sm:$0xff]
    %v79 = vld [vmem:[%s0 + $0x18] sm:$0xff]
    %v80 = vld [vmem:[%s0 + $0x20] sm:$0xff]
    %v81 = vld [vmem:[%s0 + $0x28] sm:$0xff]
    %v82 = vld [vmem:[%s0 + $0x30] sm:$0xff]
    %v83 = vld [vmem:[%s0 + $0x38] sm:$0xff]
    %v84 = vld [vmem:[#allocation2] sm:$0xf]
    %v85 = vld [vmem:[#allocation2 + $0x4] sm:$0xf]
    %v86 = vld [vmem:[#allocation2 + $0x8] sm:$0xf]
    %v87 = vld [vmem:[#allocation2 + $0xc] sm:$0xf]
    %v88 = vld [vmem:[#allocation2 + $0x10] sm:$0xf]
    %v89 = vld [vmem:[#allocation2 + $0x14] sm:$0xf]
    %v90 = vld [vmem:[#allocation2 + $0x18] sm:$0xf]
    %v91 = vld [vmem:[#allocation2 + $0x1c] sm:$0xf]
    %v92 = vld [vmem:[#allocation2 + $0x20] sm:$0xf]
    %v93 = vld [vmem:[#allocation2 + $0x24] sm:$0xf]
    %v94 = vld [vmem:[#allocation2 + $0x28] sm:$0xf]
    %v95 = vld [vmem:[#allocation2 + $0x2c] sm:$0xf]
    %v96 = vld [vmem:[#allocation2 + $0x30] sm:$0xf]
    %v97 = vld [vmem:[#allocation2 + $0x34] sm:$0xf]
    %v98 = vld [vmem:[#allocation2 + $0x38] sm:$0xf]
    %v99 = vld [vmem:[#allocation2 + $0x3c] sm:$0xf]
    %v100 = vld [vmem:[#allocation2 + $0x40] sm:$0xf]
    %v101 = vld [vmem:[#allocation2 + $0x44] sm:$0xf]
    %v102 = vld [vmem:[#allocation2 + $0x48] sm:$0xf]
    %v103 = vld [vmem:[#allocation2 + $0x4c] sm:$0xf]
    %v104 = vld [vmem:[#allocation2 + $0x50] sm:$0xf]
    %v105 = vld [vmem:[#allocation2 + $0x54] sm:$0xf]
    %v106 = vld [vmem:[#allocation2 + $0x58] sm:$0xf]
    %v107 = vld [vmem:[#allocation2 + $0x5c] sm:$0xf]
    %v108 = vld [vmem:[#allocation2 + $0x60] sm:$0xf]
    %v109 = vld [vmem:[#allocation2 + $0x64] sm:$0xf]
    %v110 = vld [vmem:[#allocation2 + $0x68] sm:$0xf]
    %v111 = vld [vmem:[#allocation2 + $0x6c] sm:$0xf]
    %v112 = vld [vmem:[#allocation2 + $0x70] sm:$0xf]
    %v113 = vld [vmem:[#allocation2 + $0x74] sm:$0xf]
    %v114 = vld [vmem:[#allocation2 + $0x78] sm:$0xf]
    %v115 = vld [vmem:[#allocation2 + $0x7c] sm:$0xf]
    %v116 = vld [vmem:[#allocation2 + $0x80] sm:$0xf]
    %v117 = vld [vmem:[#allocation2 + $0x84] sm:$0xf]
    %v118 = vld [vmem:[#allocation2 + $0x88] sm:$0xf]
    %v119 = vld [vmem:[#allocation2 + $0x8c] sm:$0xf]
    %v120 = vld [vmem:[#allocation2 + $0x90] sm:$0xf]
    %v121 = vld [vmem:[#allocation2 + $0x94] sm:$0xf]
    %v122 = vld [vmem:[#allocation2 + $0x98] sm:$0xf]
    %v123 = vld [vmem:[#allocation2 + $0x9c] sm:$0xf]
    %v124 = vld [vmem:[#allocation2 + $0xa0] sm:$0xf]
    %v125 = vld [vmem:[#allocation2 + $0xa4] sm:$0xf]
    %v126 = vld [vmem:[#allocation2 + $0xa8] sm:$0xf]
    %v127 = vld [vmem:[#allocation2 + $0xac] sm:$0xf]
    %v128 = vld [vmem:[#allocation2 + $0xb0] sm:$0xf]
    %v129 = vld [vmem:[#allocation2 + $0xb4] sm:$0xf]
    %v130 = vld [vmem:[#allocation2 + $0xb8] sm:$0xf]
    %v131 = vld [vmem:[#allocation2 + $0xbc] sm:$0xf]
    %v132 = vld [vmem:[#allocation2 + $0xc0] sm:$0xf]
    %v133 = vld [vmem:[#allocation2 + $0xc4] sm:$0xf]
    %v134 = vld [vmem:[#allocation2 + $0xc8] sm:$0xf]
    %v135 = vld [vmem:[#allocation2 + $0xcc] sm:$0xf]
    %v136 = vld [vmem:[#allocation2 + $0xd0] sm:$0xf]
    %v137 = vld [vmem:[#allocation2 + $0xd4] sm:$0xf]
    %v138 = vld [vmem:[#allocation2 + $0xd8] sm:$0xf]
    %v139 = vld [vmem:[#allocation2 + $0xdc] sm:$0xf]
    %v140 = vld [vmem:[#allocation2 + $0xe0] sm:$0xf]
    %v141 = vld [vmem:[#allocation2 + $0xe4] sm:$0xf]
    %v142 = vld [vmem:[#allocation2 + $0xe8] sm:$0xf]
    %v143 = vld [vmem:[#allocation2 + $0xec] sm:$0xf]
    %v144 = vld [vmem:[#allocation2 + $0xf0] sm:$0xf]
    %v145 = vld [vmem:[#allocation2 + $0xf4] sm:$0xf]
    %v146 = vld [vmem:[#allocation2 + $0xf8] sm:$0xf]
    %v147 = vld [vmem:[#allocation2 + $0xfc] sm:$0xf]
    %v148 = vld [vmem:[%s4] sm:$0x1]
    %v150 = vlaneseq
    %v151 = vshrl.u32 %v150, 7
    %v152 = vsub.s32 0, %v151
    %v153 = vrot.slane %v148, %v152
    %v163 = vunpack.c.l.b16 %v76
    %v164 = vunpack.c.h.b16 %v76
    %v165 = vunpack.c.l.b16 %v77
    %v166 = vunpack.c.h.b16 %v77
    %v167 = vunpack.c.l.b16 %v78
    %v168 = vunpack.c.h.b16 %v78
    %v169 = vunpack.c.l.b16 %v79
    %v170 = vunpack.c.h.b16 %v79
    %v171 = vunpack.c.l.b16 %v80
    %v172 = vunpack.c.h.b16 %v80
    %v173 = vunpack.c.l.b16 %v81
    %v174 = vunpack.c.h.b16 %v81
    %v175 = vunpack.c.l.b16 %v82
    %v176 = vunpack.c.h.b16 %v82
    %v177 = vunpack.c.l.b16 %v83
    %v178 = vunpack.c.h.b16 %v83
    %v179 = vpack.c.b16 %v167, %v163
    %v180 = vpack.c.b16 %v168, %v164
    %v181 = vpack.c.b16 %v169, %v165
    %v182 = vpack.c.b16 %v170, %v166
    %v183 = vpack.c.b16 %v175, %v171
    %v184 = vpack.c.b16 %v176, %v172
    %v185 = vpack.c.b16 %v177, %v173
    %v186 = vpack.c.b16 %v178, %v174
    %v259 = vunpack.c.l.b16 %v84
    %v260 = vunpack.c.l.b16 %v85
    %v261 = vunpack.c.l.b16 %v86
    %v262 = vunpack.c.l.b16 %v87
    %v263 = vunpack.c.l.b16 %v88
    %v264 = vunpack.c.l.b16 %v89
    %v265 = vunpack.c.l.b16 %v90
    %v266 = vunpack.c.l.b16 %v91
    %v267 = vunpack.c.l.b16 %v92
    %v268 = vunpack.c.l.b16 %v93
    %v269 = vunpack.c.l.b16 %v94
    %v270 = vunpack.c.l.b16 %v95
    %v271 = vunpack.c.l.b16 %v96
    %v272 = vunpack.c.l.b16 %v97
    %v273 = vunpack.c.l.b16 %v98
    %v274 = vunpack.c.l.b16 %v99
    %v275 = vunpack.c.l.b16 %v100
    %v276 = vunpack.c.l.b16 %v101
    %v277 = vunpack.c.l.b16 %v102
    %v278 = vunpack.c.l.b16 %v103
    %v279 = vunpack.c.l.b16 %v104
    %v280 = vunpack.c.l.b16 %v105
    %v281 = vunpack.c.l.b16 %v106
    %v282 = vunpack.c.l.b16 %v107
    %v283 = vunpack.c.l.b16 %v108
    %v284 = vunpack.c.l.b16 %v109
    %v285 = vunpack.c.l.b16 %v110
    %v286 = vunpack.c.l.b16 %v111
    %v287 = vunpack.c.l.b16 %v112
    %v288 = vunpack.c.l.b16 %v113
    %v289 = vunpack.c.l.b16 %v114
    %v290 = vunpack.c.l.b16 %v115
    %v291 = vunpack.c.l.b16 %v116
    %v292 = vunpack.c.l.b16 %v117
    %v293 = vunpack.c.l.b16 %v118
    %v294 = vunpack.c.l.b16 %v119
    %v295 = vunpack.c.l.b16 %v120
    %v296 = vunpack.c.l.b16 %v121
    %v297 = vunpack.c.l.b16 %v122
    %v298 = vunpack.c.l.b16 %v123
    %v299 = vunpack.c.l.b16 %v124
    %v300 = vunpack.c.l.b16 %v125
    %v301 = vunpack.c.l.b16 %v126
    %v302 = vunpack.c.l.b16 %v127
    %v303 = vunpack.c.l.b16 %v128
    %v304 = vunpack.c.l.b16 %v129
    %v305 = vunpack.c.l.b16 %v130
    %v306 = vunpack.c.l.b16 %v131
    %v307 = vunpack.c.l.b16 %v132
    %v308 = vunpack.c.l.b16 %v133
    %v309 = vunpack.c.l.b16 %v134
    %v310 = vunpack.c.l.b16 %v135
    %v311 = vunpack.c.l.b16 %v136
    %v312 = vunpack.c.l.b16 %v137
    %v313 = vunpack.c.l.b16 %v138
    %v314 = vunpack.c.l.b16 %v139
    %v315 = vunpack.c.l.b16 %v140
    %v316 = vunpack.c.l.b16 %v141
    %v317 = vunpack.c.l.b16 %v142
    %v318 = vunpack.c.l.b16 %v143
    %v319 = vunpack.c.l.b16 %v144
    %v320 = vunpack.c.l.b16 %v145
    %v321 = vunpack.c.l.b16 %v146
    %v322 = vunpack.c.l.b16 %v147
    %v323 = vpack.c.b16 %v260, %v259
    %v324 = vpack.c.b16 %v262, %v261
    %v325 = vpack.c.b16 %v264, %v263
    %v326 = vpack.c.b16 %v266, %v265
    %v327 = vpack.c.b16 %v268, %v267
    %v328 = vpack.c.b16 %v270, %v269
    %v329 = vpack.c.b16 %v272, %v271
    %v330 = vpack.c.b16 %v274, %v273
    %v331 = vpack.c.b16 %v276, %v275
    %v332 = vpack.c.b16 %v278, %v277
    %v333 = vpack.c.b16 %v280, %v279
    %v334 = vpack.c.b16 %v282, %v281
    %v335 = vpack.c.b16 %v284, %v283
    %v336 = vpack.c.b16 %v286, %v285
    %v337 = vpack.c.b16 %v288, %v287
    %v338 = vpack.c.b16 %v290, %v289
    %v339 = vpack.c.b16 %v292, %v291
    %v340 = vpack.c.b16 %v294, %v293
    %v341 = vpack.c.b16 %v296, %v295
    %v342 = vpack.c.b16 %v298, %v297
    %v343 = vpack.c.b16 %v300, %v299
    %v344 = vpack.c.b16 %v302, %v301
    %v345 = vpack.c.b16 %v304, %v303
    %v346 = vpack.c.b16 %v306, %v305
    %v347 = vpack.c.b16 %v308, %v307
    %v348 = vpack.c.b16 %v310, %v309
    %v349 = vpack.c.b16 %v312, %v311
    %v350 = vpack.c.b16 %v314, %v313
    %v351 = vpack.c.b16 %v316, %v315
    %v352 = vpack.c.b16 %v318, %v317
    %v353 = vpack.c.b16 %v320, %v319
    %v354 = vpack.c.b16 %v322, %v321
    %387 = vmatprep.subr.bf16.mxu0 0
    %388 = vmatpush1.bf16.msra.mxu0 %v330
    %389 = vmatprep.subr.bf16.mxu0 0
    %390 = vmatpush1.bf16.msra.mxu0 %v329
    %391 = vmatprep.subr.bf16.mxu0 0
    %392 = vmatpush1.bf16.msra.mxu0 %v328
    %393 = vmatprep.subr.bf16.mxu0 0
    %394 = vmatpush1.bf16.msra.mxu0 %v327
    %395 = vmatprep.subr.bf16.mxu0 0
    %396 = vmatpush1.bf16.msra.mxu0 %v326
    %397 = vmatprep.subr.bf16.mxu0 0
    %398 = vmatpush1.bf16.msra.mxu0 %v325
    %399 = vmatprep.subr.bf16.mxu0 0
    %400 = vmatpush1.bf16.msra.mxu0 %v324
    %401 = vmatprep.subr.bf16.mxu0 0
    %402 = vmatpush1.bf16.msra.mxu0 %v323
    %403 = vmatprep.subr.bf16.mxu0 0
    %404 = vmatpush2.bf16.msra.mxu0 %v338
    %405 = vmatprep.subr.bf16.mxu0 0
    %406 = vmatpush2.bf16.msra.mxu0 %v337
    %407 = vmatprep.subr.bf16.mxu0 0
    %408 = vmatpush2.bf16.msra.mxu0 %v336
    %409 = vmatprep.subr.bf16.mxu0 0
    %410 = vmatpush2.bf16.msra.mxu0 %v335
    %411 = vmatprep.subr.bf16.mxu0 0
    %412 = vmatpush2.bf16.msra.mxu0 %v334
    %413 = vmatprep.subr.bf16.mxu0 0
    %414 = vmatpush2.bf16.msra.mxu0 %v333
    %415 = vmatprep.subr.bf16.mxu0 0
    %416 = vmatpush2.bf16.msra.mxu0 %v332
    %417 = vmatprep.subr.bf16.mxu0 0
    %418 = vmatpush2.bf16.msra.mxu0 %v331
    %419 = vmatprep.mubr.bf16.mxu0 %v180
    %420 = vmatmul.mubr.bf16.gmra.mxu0 %v179
    %v421 = vpop.f32.mrf.mxu0
    %v422 = vadd.f32 %v153, %v421
    %v423 = vpop.f32.mrf.mxu0
    %v424 = vpop.f32.mrf.mxu0
    %v425 = vadd.f32 %v153, %v424
    %v426 = vpop.f32.mrf.mxu0
    %427 = vmatprep.mubr.bf16.mxu0 %v184
    %428 = vmatmul.mubr.bf16.gmra.mxu0 %v183
    %v429 = vpop.f32.mrf.mxu0
    %v430 = vadd.f32 %v153, %v429
    %v431 = vpop.f32.mrf.mxu0
    %v432 = vpop.f32.mrf.mxu0
    %v433 = vadd.f32 %v153, %v432
    %v434 = vpop.f32.mrf.mxu0
    %435 = vdwg.mxu0
    %436 = vmatprep.subr.bf16.mxu0 0
    %437 = vmatpush1.bf16.msra.mxu0 %v346
    %438 = vmatprep.subr.bf16.mxu0 0
    %439 = vmatpush1.bf16.msra.mxu0 %v345
    %440 = vmatprep.subr.bf16.mxu0 0
    %441 = vmatpush1.bf16.msra.mxu0 %v344
    %442 = vmatprep.subr.bf16.mxu0 0
    %443 = vmatpush1.bf16.msra.mxu0 %v343
    %444 = vmatprep.subr.bf16.mxu0 0
    %445 = vmatpush1.bf16.msra.mxu0 %v342
    %446 = vmatprep.subr.bf16.mxu0 0
    %447 = vmatpush1.bf16.msra.mxu0 %v341
    %448 = vmatprep.subr.bf16.mxu0 0
    %449 = vmatpush1.bf16.msra.mxu0 %v340
    %450 = vmatprep.subr.bf16.mxu0 0
    %451 = vmatpush1.bf16.msra.mxu0 %v339
    %452 = vmatprep.subr.bf16.mxu0 0
    %453 = vmatpush2.bf16.msra.mxu0 %v354
    %454 = vmatprep.subr.bf16.mxu0 0
    %455 = vmatpush2.bf16.msra.mxu0 %v353
    %456 = vmatprep.subr.bf16.mxu0 0
    %457 = vmatpush2.bf16.msra.mxu0 %v352
    %458 = vmatprep.subr.bf16.mxu0 0
    %459 = vmatpush2.bf16.msra.mxu0 %v351
    %460 = vmatprep.subr.bf16.mxu0 0
    %461 = vmatpush2.bf16.msra.mxu0 %v350
    %462 = vmatprep.subr.bf16.mxu0 0
    %463 = vmatpush2.bf16.msra.mxu0 %v349
    %464 = vmatprep.subr.bf16.mxu0 0
    %465 = vmatpush2.bf16.msra.mxu0 %v348
    %466 = vmatprep.subr.bf16.mxu0 0
    %467 = vmatpush2.bf16.msra.mxu0 %v347
    %468 = vmatprep.mubr.bf16.mxu0 %v182
    %469 = vmatmul.mubr.bf16.gmra.mxu0 %v181
    %v470 = vpop.f32.mrf.mxu0
    %v471 = vadd.f32 %v422, %v470
    %v472 = vpop.f32.mrf.mxu0
    %v473 = vpop.f32.mrf.mxu0
    %v474 = vadd.f32 %v425, %v473
    %v475 = vpop.f32.mrf.mxu0
    %476 = vmatprep.mubr.bf16.mxu0 %v186
    %477 = vmatmul.mubr.bf16.gmra.mxu0 %v185
    %v478 = vpop.f32.mrf.mxu0
    %v479 = vadd.f32 %v430, %v478
    %v480 = vpop.f32.mrf.mxu0
    %v481 = vpop.f32.mrf.mxu0
    %v482 = vadd.f32 %v433, %v481
    %v483 = vpop.f32.mrf.mxu0
    %484 = vdwg.mxu0
    %v485 = vld [vmem:[%s1] sm:$0xff]
    %v486 = vld [vmem:[%s2] sm:$0xff]
    %s487 = scalar_lea.vmem %s1, 8
    %v488 = vld [vmem:[%s487] sm:$0xff]
    %s489 = scalar_lea.vmem %s2, 8
    %v490 = vld [vmem:[%s489] sm:$0xff]
    %v491 = vld [vmem:[%s5] sm:$0xf]
    %v492 = vld [vmem:[%s5 + $0x4] sm:$0xf]
    %v493 = vld [vmem:[%s5 + $0x8] sm:$0xf]
    %v494 = vld [vmem:[%s5 + $0xc] sm:$0xf]
    %v495 = vld [vmem:[%s6] sm:$0xf]
    %v496 = vld [vmem:[%s6 + $0x4] sm:$0xf]
    %v497 = vld [vmem:[%s6 + $0x8] sm:$0xf]
    %v498 = vld [vmem:[%s6 + $0xc] sm:$0xf]
    %v499 = vld [vmem:[%s7] sm:$0xf]
    %v500 = vld [vmem:[%s7 + $0x4] sm:$0xf]
    %v501 = vld [vmem:[%s7 + $0x8] sm:$0xf]
    %v502 = vld [vmem:[%s7 + $0xc] sm:$0xf]
    %v503 = vld [vmem:[%s8] sm:$0x1]
    %v504 = vld [vmem:[%s9] sm:$0xf]
    %v505 = vld [vmem:[%s9 + $0x4] sm:$0xf]
    %v506 = vld [vmem:[%s9 + $0x8] sm:$0xf]
    %v507 = vld [vmem:[%s9 + $0xc] sm:$0xf]
    %v508 = vld [vmem:[%s10] sm:$0x1]
    %v509 = vld [vmem:[%s11] sm:$0xf]
    %v510 = vld [vmem:[%s11 + $0x4] sm:$0xf]
    %v511 = vld [vmem:[%s11 + $0x8] sm:$0xf]
    %v512 = vld [vmem:[%s11 + $0xc] sm:$0xf]
    %v513 = vld [vmem:[%s12] sm:$0xf]
    %v514 = vld [vmem:[%s12 + $0x4] sm:$0xf]
    %v515 = vld [vmem:[%s12 + $0x8] sm:$0xf]
    %v516 = vld [vmem:[%s12 + $0xc] sm:$0xf]
    %v517 = vld [vmem:[%s13] sm:$0xf]
    %v518 = vld [vmem:[%s13 + $0x4] sm:$0xf]
    %v519 = vld [vmem:[%s13 + $0x8] sm:$0xf]
    %v520 = vld [vmem:[%s13 + $0xc] sm:$0xf]
    %v521 = vld [vmem:[%s14] sm:$0x1]
    %v522 = vpack.c.bf16 %v488, %v488
    %v524 = vlaneseq
    %v525 = vshrl.u32 %v524, 7
    %v526 = vsub.s32 0, %v525
    %v527 = vrot.slane %v503, %v526
    %v533 = vunpack.c.l.b16 %v499
    %v534 = vunpack.c.l.b16 %v500
    %v535 = vunpack.c.l.b16 %v501
    %v536 = vunpack.c.l.b16 %v502
    %v537 = vpack.c.b16 %v534, %v533
    %v538 = vpack.c.b16 %v536, %v535
    %vm541 = vcmask 261120
    %v543 = vsel %vm541, %v522, 0
    %545 = vmatprep.subr.bf16.mxu0 0
    %546 = vmatpush1.bf16.msra.mxu0 0
    %547 = vmatprep.subr.bf16.mxu0 0
    %548 = vmatpush1.bf16.msra.mxu0 0
    %549 = vmatprep.subr.bf16.mxu0 0
    %550 = vmatpush1.bf16.msra.mxu0 0
    %551 = vmatprep.subr.bf16.mxu0 0
    %552 = vmatpush1.bf16.msra.mxu0 0
    %553 = vmatprep.subr.bf16.mxu0 0
    %554 = vmatpush1.bf16.msra.mxu0 0
    %555 = vmatprep.subr.bf16.mxu0 0
    %556 = vmatpush1.bf16.msra.mxu0 0
    %557 = vmatprep.subr.bf16.mxu0 0
    %558 = vmatpush1.bf16.msra.mxu0 %v538
    %559 = vmatprep.subr.bf16.mxu0 0
    %560 = vmatpush1.bf16.msra.mxu0 %v537
    %561 = vmatprep.subr.bf16.mxu0 0
    %562 = vmatpush2.bf16.msra.mxu0 0
    %563 = vmatprep.subr.bf16.mxu0 0
    %564 = vmatpush2.bf16.msra.mxu0 0
    %565 = vmatprep.subr.bf16.mxu0 0
    %566 = vmatpush2.bf16.msra.mxu0 0
    %567 = vmatprep.subr.bf16.mxu0 0
    %568 = vmatpush2.bf16.msra.mxu0 0
    %569 = vmatprep.subr.bf16.mxu0 0
    %570 = vmatpush2.bf16.msra.mxu0 0
    %571 = vmatprep.subr.bf16.mxu0 0
    %572 = vmatpush2.bf16.msra.mxu0 0
    %573 = vmatprep.subr.bf16.mxu0 0
    %574 = vmatpush2.bf16.msra.mxu0 0
    %575 = vmatprep.subr.bf16.mxu0 0
    %576 = vmatpush2.bf16.msra.mxu0 0
    %577 = vmatprep.mubr.bf16.mxu0 0
    %578 = vmatmul.mubr.bf16.gmra.mxu0 %v543
    %v579 = vpop.f32.mrf.mxu0
    %v580 = vadd.f32 %v527, %v579
    %v581 = vpop.f32.mrf.mxu0
    %v582 = vpop.f32.mrf.mxu0
    %v583 = vpop.f32.mrf.mxu0
    %584 = vdwg.mxu0
    %v585 = vpack.c.bf16 %v485, %v485
    %v590 = vunpack.c.l.b16 %v491
    %v591 = vunpack.c.l.b16 %v492
    %v592 = vunpack.c.l.b16 %v493
    %v593 = vunpack.c.l.b16 %v494
    %v594 = vpack.c.b16 %v591, %v590
    %v595 = vpack.c.b16 %v593, %v592
    %v599 = vsel %vm541, %v585, 0
    %601 = vmatprep.subr.bf16.mxu0 0
    %602 = vmatpush1.bf16.msra.mxu0 0
    %603 = vmatprep.subr.bf16.mxu0 0
    %604 = vmatpush1.bf16.msra.mxu0 0
    %605 = vmatprep.subr.bf16.mxu0 0
    %606 = vmatpush1.bf16.msra.mxu0 0
    %607 = vmatprep.subr.bf16.mxu0 0
    %608 = vmatpush1.bf16.msra.mxu0 0
    %609 = vmatprep.subr.bf16.mxu0 0
    %610 = vmatpush1.bf16.msra.mxu0 0
    %611 = vmatprep.subr.bf16.mxu0 0
    %612 = vmatpush1.bf16.msra.mxu0 0
    %613 = vmatprep.subr.bf16.mxu0 0
    %614 = vmatpush1.bf16.msra.mxu0 %v595
    %615 = vmatprep.subr.bf16.mxu0 0
    %616 = vmatpush1.bf16.msra.mxu0 %v594
    %617 = vmatprep.subr.bf16.mxu0 0
    %618 = vmatpush2.bf16.msra.mxu0 0
    %619 = vmatprep.subr.bf16.mxu0 0
    %620 = vmatpush2.bf16.msra.mxu0 0
    %621 = vmatprep.subr.bf16.mxu0 0
    %622 = vmatpush2.bf16.msra.mxu0 0
    %623 = vmatprep.subr.bf16.mxu0 0
    %624 = vmatpush2.bf16.msra.mxu0 0
    %625 = vmatprep.subr.bf16.mxu0 0
    %626 = vmatpush2.bf16.msra.mxu0 0
    %627 = vmatprep.subr.bf16.mxu0 0
    %628 = vmatpush2.bf16.msra.mxu0 0
    %629 = vmatprep.subr.bf16.mxu0 0
    %630 = vmatpush2.bf16.msra.mxu0 0
    %631 = vmatprep.subr.bf16.mxu0 0
    %632 = vmatpush2.bf16.msra.mxu0 0
    %633 = vmatprep.mubr.bf16.mxu0 0
    %634 = vmatmul.mubr.bf16.gmra.mxu0 %v599
    %v635 = vpop.f32.mrf.mxu0
    %v636 = vadd.f32 0.0, %v635
    %v637 = vpop.f32.mrf.mxu0
    %v638 = vpop.f32.mrf.mxu0
    %v639 = vpop.f32.mrf.mxu0
    %640 = vdwg.mxu0
    %v641 = vadd.f32 %v471, %v636
    %v642 = vmul.f32 %v641, 0.5
    %v643 = vsel %vm75, %v641, %v642
    %v644 = vtanh.pop %v643
    %v645 = vmul.f32 %v644, 0.5
    %v646 = vadd.f32 %v645, 0.5
    %v647 = vsel %vm75, %v644, %v646
    %649 = vrot.lane.b32.xlu0 %v486, 32
    %v650 = vpop.permute.xlu0 %649
    %v652 = vmul.f32 %v647, %v650
    %654 = vrot.lane.b32.xlu0 %v647, 64
    %v655 = vpop.permute.xlu0 %654
    %v657 = vmul.f32 %v647, %v655
    %659 = vrot.lane.b32.xlu0 %v657, 32
    %v660 = vpop.permute.xlu0 %659
    %v662 = vadd.f32 %v652, %v660
    %v663 = vtanh.pop %v662
    %665 = vrot.lane.b32.xlu0 %v663, 64
    %v666 = vpop.permute.xlu0 %665
    %v668 = vmul.f32 %v647, %v666
    %v669 = vpack.c.bf16 %v668, %v668
    %671 = vrot.lane.b32.xlu0 %v669, 32
    %v672 = vpop.permute.xlu0 %671
    %v677 = vunpack.c.l.b16 %v495
    %v678 = vunpack.c.l.b16 %v496
    %v679 = vunpack.c.l.b16 %v497
    %v680 = vunpack.c.l.b16 %v498
    %v681 = vpack.c.b16 %v678, %v677
    %v682 = vpack.c.b16 %v680, %v679
    %v686 = vsel %vm541, %v672, 0
    %688 = vmatprep.subr.bf16.mxu0 0
    %689 = vmatpush1.bf16.msra.mxu0 0
    %690 = vmatprep.subr.bf16.mxu0 0
    %691 = vmatpush1.bf16.msra.mxu0 0
    %692 = vmatprep.subr.bf16.mxu0 0
    %693 = vmatpush1.bf16.msra.mxu0 0
    %694 = vmatprep.subr.bf16.mxu0 0
    %695 = vmatpush1.bf16.msra.mxu0 0
    %696 = vmatprep.subr.bf16.mxu0 0
    %697 = vmatpush1.bf16.msra.mxu0 0
    %698 = vmatprep.subr.bf16.mxu0 0
    %699 = vmatpush1.bf16.msra.mxu0 0
    %700 = vmatprep.subr.bf16.mxu0 0
    %701 = vmatpush1.bf16.msra.mxu0 %v682
    %702 = vmatprep.subr.bf16.mxu0 0
    %703 = vmatpush1.bf16.msra.mxu0 %v681
    %704 = vmatprep.subr.bf16.mxu0 0
    %705 = vmatpush2.bf16.msra.mxu0 0
    %706 = vmatprep.subr.bf16.mxu0 0
    %707 = vmatpush2.bf16.msra.mxu0 0
    %708 = vmatprep.subr.bf16.mxu0 0
    %709 = vmatpush2.bf16.msra.mxu0 0
    %710 = vmatprep.subr.bf16.mxu0 0
    %711 = vmatpush2.bf16.msra.mxu0 0
    %712 = vmatprep.subr.bf16.mxu0 0
    %713 = vmatpush2.bf16.msra.mxu0 0
    %714 = vmatprep.subr.bf16.mxu0 0
    %715 = vmatpush2.bf16.msra.mxu0 0
    %716 = vmatprep.subr.bf16.mxu0 0
    %717 = vmatpush2.bf16.msra.mxu0 0
    %718 = vmatprep.subr.bf16.mxu0 0
    %719 = vmatpush2.bf16.msra.mxu0 0
    %720 = vmatprep.mubr.bf16.mxu0 0
    %721 = vmatmul.mubr.bf16.gmra.mxu0 %v686
    %v722 = vpop.f32.mrf.mxu0
    %v723 = vadd.f32 %v580, %v722
    %v724 = vpop.f32.mrf.mxu0
    %v725 = vpop.f32.mrf.mxu0
    %v726 = vpop.f32.mrf.mxu0
    %727 = vdwg.mxu0
    %v728 = vmul.f32 %v723, 0.5
    %v729 = vsel %vm75, %v723, %v728
    %v730 = vtanh.pop %v729
    %v731 = vmul.f32 %v730, 0.5
    %v732 = vadd.f32 %v731, 0.5
    %v733 = vsel %vm75, %v730, %v732
    %735 = vrot.lane.b32.xlu0 %v490, 32
    %v736 = vpop.permute.xlu0 %735
    %v738 = vmul.f32 %v733, %v736
    %740 = vrot.lane.b32.xlu0 %v733, 64
    %v741 = vpop.permute.xlu0 %740
    %v743 = vmul.f32 %v733, %v741
    %745 = vrot.lane.b32.xlu0 %v743, 32
    %v746 = vpop.permute.xlu0 %745
    %v748 = vadd.f32 %v738, %v746
    %v749 = vtanh.pop %v748
    %751 = vrot.lane.b32.xlu0 %v749, 64
    %v752 = vpop.permute.xlu0 %751
    %v754 = vmul.f32 %v733, %v752
    %v755 = vpack.c.bf16 %v754, %v754
    %v757 = vlaneseq
    %v758 = vshrl.u32 %v757, 7
    %v759 = vsub.s32 0, %v758
    %v760 = vrot.slane %v508, %v759
    %763 = vrot.lane.b32.xlu0 %v755, 32
    %v764 = vpop.permute.xlu0 %763
    %v769 = vunpack.c.l.b16 %v504
    %v770 = vunpack.c.l.b16 %v505
    %v771 = vunpack.c.l.b16 %v506
    %v772 = vunpack.c.l.b16 %v507
    %v773 = vpack.c.b16 %v770, %v769
    %v774 = vpack.c.b16 %v772, %v771
    %v778 = vsel %vm541, %v764, 0
    %780 = vmatprep.subr.bf16.mxu0 0
    %781 = vmatpush1.bf16.msra.mxu0 0
    %782 = vmatprep.subr.bf16.mxu0 0
    %783 = vmatpush1.bf16.msra.mxu0 0
    %784 = vmatprep.subr.bf16.mxu0 0
    %785 = vmatpush1.bf16.msra.mxu0 0
    %786 = vmatprep.subr.bf16.mxu0 0
    %787 = vmatpush1.bf16.msra.mxu0 0
    %788 = vmatprep.subr.bf16.mxu0 0
    %789 = vmatpush1.bf16.msra.mxu0 0
    %790 = vmatprep.subr.bf16.mxu0 0
    %791 = vmatpush1.bf16.msra.mxu0 0
    %792 = vmatprep.subr.bf16.mxu0 0
    %793 = vmatpush1.bf16.msra.mxu0 %v774
    %794 = vmatprep.subr.bf16.mxu0 0
    %795 = vmatpush1.bf16.msra.mxu0 %v773
    %796 = vmatprep.subr.bf16.mxu0 0
    %797 = vmatpush2.bf16.msra.mxu0 0
    %798 = vmatprep.subr.bf16.mxu0 0
    %799 = vmatpush2.bf16.msra.mxu0 0
    %800 = vmatprep.subr.bf16.mxu0 0
    %801 = vmatpush2.bf16.msra.mxu0 0
    %802 = vmatprep.subr.bf16.mxu0 0
    %803 = vmatpush2.bf16.msra.mxu0 0
    %804 = vmatprep.subr.bf16.mxu0 0
    %805 = vmatpush2.bf16.msra.mxu0 0
    %806 = vmatprep.subr.bf16.mxu0 0
    %807 = vmatpush2.bf16.msra.mxu0 0
    %808 = vmatprep.subr.bf16.mxu0 0
    %809 = vmatpush2.bf16.msra.mxu0 0
    %810 = vmatprep.subr.bf16.mxu0 0
    %811 = vmatpush2.bf16.msra.mxu0 0
    %812 = vmatprep.mubr.bf16.mxu0 0
    %813 = vmatmul.mubr.bf16.gmra.mxu0 %v778
    %v814 = vpop.f32.mrf.mxu0
    %v815 = vadd.f32 %v760, %v814
    %v816 = vpop.f32.mrf.mxu0
    %v817 = vpop.f32.mrf.mxu0
    %v818 = vpop.f32.mrf.mxu0
    %819 = vdwg.mxu0
    %820 = vmatprep.subr.bf16.mxu0 0
    %821 = vmatpush1.bf16.msra.mxu0 0
    %822 = vmatprep.subr.bf16.mxu0 0
    %823 = vmatpush1.bf16.msra.mxu0 0
    %824 = vmatprep.subr.bf16.mxu0 0
    %825 = vmatpush1.bf16.msra.mxu0 0
    %826 = vmatprep.subr.bf16.mxu0 0
    %827 = vmatpush1.bf16.msra.mxu0 0
    %828 = vmatprep.subr.bf16.mxu0 0
    %829 = vmatpush1.bf16.msra.mxu0 0
    %830 = vmatprep.subr.bf16.mxu0 0
    %831 = vmatpush1.bf16.msra.mxu0 0
    %832 = vmatprep.subr.bf16.mxu0 0
    %833 = vmatpush1.bf16.msra.mxu0 %v538
    %834 = vmatprep.subr.bf16.mxu0 0
    %835 = vmatpush1.bf16.msra.mxu0 %v537
    %836 = vmatprep.subr.bf16.mxu0 0
    %837 = vmatpush2.bf16.msra.mxu0 0
    %838 = vmatprep.subr.bf16.mxu0 0
    %839 = vmatpush2.bf16.msra.mxu0 0
    %840 = vmatprep.subr.bf16.mxu0 0
    %841 = vmatpush2.bf16.msra.mxu0 0
    %842 = vmatprep.subr.bf16.mxu0 0
    %843 = vmatpush2.bf16.msra.mxu0 0
    %844 = vmatprep.subr.bf16.mxu0 0
    %845 = vmatpush2.bf16.msra.mxu0 0
    %846 = vmatprep.subr.bf16.mxu0 0
    %847 = vmatpush2.bf16.msra.mxu0 0
    %848 = vmatprep.subr.bf16.mxu0 0
    %849 = vmatpush2.bf16.msra.mxu0 0
    %850 = vmatprep.subr.bf16.mxu0 0
    %851 = vmatpush2.bf16.msra.mxu0 0
    %852 = vmatprep.mubr.bf16.mxu0 0
    %853 = vmatmul.mubr.bf16.gmra.mxu0 %v778
    %v854 = vpop.f32.mrf.mxu0
    %v855 = vadd.f32 %v527, %v854
    %v856 = vpop.f32.mrf.mxu0
    %v857 = vpop.f32.mrf.mxu0
    %v858 = vpop.f32.mrf.mxu0
    %859 = vdwg.mxu0
    %860 = vmatprep.subr.bf16.mxu0 0
    %861 = vmatpush1.bf16.msra.mxu0 0
    %862 = vmatprep.subr.bf16.mxu0 0
    %863 = vmatpush1.bf16.msra.mxu0 0
    %864 = vmatprep.subr.bf16.mxu0 0
    %865 = vmatpush1.bf16.msra.mxu0 0
    %866 = vmatprep.subr.bf16.mxu0 0
    %867 = vmatpush1.bf16.msra.mxu0 0
    %868 = vmatprep.subr.bf16.mxu0 0
    %869 = vmatpush1.bf16.msra.mxu0 0
    %870 = vmatprep.subr.bf16.mxu0 0
    %871 = vmatpush1.bf16.msra.mxu0 0
    %872 = vmatprep.subr.bf16.mxu0 0
    %873 = vmatpush1.bf16.msra.mxu0 %v595
    %874 = vmatprep.subr.bf16.mxu0 0
    %875 = vmatpush1.bf16.msra.mxu0 %v594
    %876 = vmatprep.subr.bf16.mxu0 0
    %877 = vmatpush2.bf16.msra.mxu0 0
    %878 = vmatprep.subr.bf16.mxu0 0
    %879 = vmatpush2.bf16.msra.mxu0 0
    %880 = vmatprep.subr.bf16.mxu0 0
    %881 = vmatpush2.bf16.msra.mxu0 0
    %882 = vmatprep.subr.bf16.mxu0 0
    %883 = vmatpush2.bf16.msra.mxu0 0
    %884 = vmatprep.subr.bf16.mxu0 0
    %885 = vmatpush2.bf16.msra.mxu0 0
    %886 = vmatprep.subr.bf16.mxu0 0
    %887 = vmatpush2.bf16.msra.mxu0 0
    %888 = vmatprep.subr.bf16.mxu0 0
    %889 = vmatpush2.bf16.msra.mxu0 0
    %890 = vmatprep.subr.bf16.mxu0 0
    %891 = vmatpush2.bf16.msra.mxu0 0
    %892 = vmatprep.mubr.bf16.mxu0 0
    %893 = vmatmul.mubr.bf16.gmra.mxu0 %v686
    %v894 = vpop.f32.mrf.mxu0
    %v895 = vadd.f32 0.0, %v894
    %v896 = vpop.f32.mrf.mxu0
    %v897 = vpop.f32.mrf.mxu0
    %v898 = vpop.f32.mrf.mxu0
    %899 = vdwg.mxu0
    %v900 = vadd.f32 %v474, %v895
    %v901 = vmul.f32 %v900, 0.5
    %v902 = vsel %vm75, %v900, %v901
    %v903 = vtanh.pop %v902
    %v904 = vmul.f32 %v903, 0.5
    %v905 = vadd.f32 %v904, 0.5
    %v906 = vsel %vm75, %v903, %v905
    %v907 = vmul.f32 %v906, %v662
    %909 = vrot.lane.b32.xlu0 %v906, 64
    %v910 = vpop.permute.xlu0 %909
    %v912 = vmul.f32 %v906, %v910
    %914 = vrot.lane.b32.xlu0 %v912, 32
    %v915 = vpop.permute.xlu0 %914
    %v917 = vadd.f32 %v907, %v915
    %v918 = vtanh.pop %v917
    %920 = vrot.lane.b32.xlu0 %v918, 64
    %v921 = vpop.permute.xlu0 %920
    %v923 = vmul.f32 %v906, %v921
    %v924 = vpack.c.bf16 %v923, %v923
    %926 = vrot.lane.b32.xlu0 %v924, 32
    %v927 = vpop.permute.xlu0 %926
    %v929 = vsel %vm541, %v927, 0
    %931 = vmatprep.subr.bf16.mxu0 0
    %932 = vmatpush1.bf16.msra.mxu0 0
    %933 = vmatprep.subr.bf16.mxu0 0
    %934 = vmatpush1.bf16.msra.mxu0 0
    %935 = vmatprep.subr.bf16.mxu0 0
    %936 = vmatpush1.bf16.msra.mxu0 0
    %937 = vmatprep.subr.bf16.mxu0 0
    %938 = vmatpush1.bf16.msra.mxu0 0
    %939 = vmatprep.subr.bf16.mxu0 0
    %940 = vmatpush1.bf16.msra.mxu0 0
    %941 = vmatprep.subr.bf16.mxu0 0
    %942 = vmatpush1.bf16.msra.mxu0 0
    %943 = vmatprep.subr.bf16.mxu0 0
    %944 = vmatpush1.bf16.msra.mxu0 %v682
    %945 = vmatprep.subr.bf16.mxu0 0
    %946 = vmatpush1.bf16.msra.mxu0 %v681
    %947 = vmatprep.subr.bf16.mxu0 0
    %948 = vmatpush2.bf16.msra.mxu0 0
    %949 = vmatprep.subr.bf16.mxu0 0
    %950 = vmatpush2.bf16.msra.mxu0 0
    %951 = vmatprep.subr.bf16.mxu0 0
    %952 = vmatpush2.bf16.msra.mxu0 0
    %953 = vmatprep.subr.bf16.mxu0 0
    %954 = vmatpush2.bf16.msra.mxu0 0
    %955 = vmatprep.subr.bf16.mxu0 0
    %956 = vmatpush2.bf16.msra.mxu0 0
    %957 = vmatprep.subr.bf16.mxu0 0
    %958 = vmatpush2.bf16.msra.mxu0 0
    %959 = vmatprep.subr.bf16.mxu0 0
    %960 = vmatpush2.bf16.msra.mxu0 0
    %961 = vmatprep.subr.bf16.mxu0 0
    %962 = vmatpush2.bf16.msra.mxu0 0
    %963 = vmatprep.mubr.bf16.mxu0 0
    %964 = vmatmul.mubr.bf16.gmra.mxu0 %v929
    %v965 = vpop.f32.mrf.mxu0
    %v966 = vadd.f32 %v855, %v965
    %v967 = vpop.f32.mrf.mxu0
    %v968 = vpop.f32.mrf.mxu0
    %v969 = vpop.f32.mrf.mxu0
    %970 = vdwg.mxu0
    %v971 = vmul.f32 %v966, 0.5
    %v972 = vsel %vm75, %v966, %v971
    %v973 = vtanh.pop %v972
    %v974 = vmul.f32 %v973, 0.5
    %v975 = vadd.f32 %v974, 0.5
    %v976 = vsel %vm75, %v973, %v975
    %v977 = vmul.f32 %v976, %v748
    %979 = vrot.lane.b32.xlu0 %v976, 64
    %v980 = vpop.permute.xlu0 %979
    %v982 = vmul.f32 %v976, %v980
    %984 = vrot.lane.b32.xlu0 %v982, 32
    %v985 = vpop.permute.xlu0 %984
    %v987 = vadd.f32 %v977, %v985
    %v988 = vtanh.pop %v987
    %990 = vrot.lane.b32.xlu0 %v988, 64
    %v991 = vpop.permute.xlu0 %990
    %v993 = vmul.f32 %v976, %v991
    %v994 = vpack.c.bf16 %v993, %v993
    %996 = vrot.lane.b32.xlu0 %v994, 32
    %v997 = vpop.permute.xlu0 %996
    %v999 = vsel %vm541, %v997, 0
    %1001 = vmatprep.subr.bf16.mxu0 0
    %1002 = vmatpush1.bf16.msra.mxu0 0
    %1003 = vmatprep.subr.bf16.mxu0 0
    %1004 = vmatpush1.bf16.msra.mxu0 0
    %1005 = vmatprep.subr.bf16.mxu0 0
    %1006 = vmatpush1.bf16.msra.mxu0 0
    %1007 = vmatprep.subr.bf16.mxu0 0
    %1008 = vmatpush1.bf16.msra.mxu0 0
    %1009 = vmatprep.subr.bf16.mxu0 0
    %1010 = vmatpush1.bf16.msra.mxu0 0
    %1011 = vmatprep.subr.bf16.mxu0 0
    %1012 = vmatpush1.bf16.msra.mxu0 0
    %1013 = vmatprep.subr.bf16.mxu0 0
    %1014 = vmatpush1.bf16.msra.mxu0 %v774
    %1015 = vmatprep.subr.bf16.mxu0 0
    %1016 = vmatpush1.bf16.msra.mxu0 %v773
    %1017 = vmatprep.subr.bf16.mxu0 0
    %1018 = vmatpush2.bf16.msra.mxu0 0
    %1019 = vmatprep.subr.bf16.mxu0 0
    %1020 = vmatpush2.bf16.msra.mxu0 0
    %1021 = vmatprep.subr.bf16.mxu0 0
    %1022 = vmatpush2.bf16.msra.mxu0 0
    %1023 = vmatprep.subr.bf16.mxu0 0
    %1024 = vmatpush2.bf16.msra.mxu0 0
    %1025 = vmatprep.subr.bf16.mxu0 0
    %1026 = vmatpush2.bf16.msra.mxu0 0
    %1027 = vmatprep.subr.bf16.mxu0 0
    %1028 = vmatpush2.bf16.msra.mxu0 0
    %1029 = vmatprep.subr.bf16.mxu0 0
    %1030 = vmatpush2.bf16.msra.mxu0 0
    %1031 = vmatprep.subr.bf16.mxu0 0
    %1032 = vmatpush2.bf16.msra.mxu0 0
    %1033 = vmatprep.mubr.bf16.mxu0 0
    %1034 = vmatmul.mubr.bf16.gmra.mxu0 %v999
    %v1035 = vpop.f32.mrf.mxu0
    %v1036 = vadd.f32 %v760, %v1035
    %v1037 = vpop.f32.mrf.mxu0
    %v1038 = vpop.f32.mrf.mxu0
    %v1039 = vpop.f32.mrf.mxu0
    %1040 = vdwg.mxu0
    %1041 = vmatprep.subr.bf16.mxu0 0
    %1042 = vmatpush1.bf16.msra.mxu0 0
    %1043 = vmatprep.subr.bf16.mxu0 0
    %1044 = vmatpush1.bf16.msra.mxu0 0
    %1045 = vmatprep.subr.bf16.mxu0 0
    %1046 = vmatpush1.bf16.msra.mxu0 0
    %1047 = vmatprep.subr.bf16.mxu0 0
    %1048 = vmatpush1.bf16.msra.mxu0 0
    %1049 = vmatprep.subr.bf16.mxu0 0
    %1050 = vmatpush1.bf16.msra.mxu0 0
    %1051 = vmatprep.subr.bf16.mxu0 0
    %1052 = vmatpush1.bf16.msra.mxu0 0
    %1053 = vmatprep.subr.bf16.mxu0 0
    %1054 = vmatpush1.bf16.msra.mxu0 %v538
    %1055 = vmatprep.subr.bf16.mxu0 0
    %1056 = vmatpush1.bf16.msra.mxu0 %v537
    %1057 = vmatprep.subr.bf16.mxu0 0
    %1058 = vmatpush2.bf16.msra.mxu0 0
    %1059 = vmatprep.subr.bf16.mxu0 0
    %1060 = vmatpush2.bf16.msra.mxu0 0
    %1061 = vmatprep.subr.bf16.mxu0 0
    %1062 = vmatpush2.bf16.msra.mxu0 0
    %1063 = vmatprep.subr.bf16.mxu0 0
    %1064 = vmatpush2.bf16.msra.mxu0 0
    %1065 = vmatprep.subr.bf16.mxu0 0
    %1066 = vmatpush2.bf16.msra.mxu0 0
    %1067 = vmatprep.subr.bf16.mxu0 0
    %1068 = vmatpush2.bf16.msra.mxu0 0
    %1069 = vmatprep.subr.bf16.mxu0 0
    %1070 = vmatpush2.bf16.msra.mxu0 0
    %1071 = vmatprep.subr.bf16.mxu0 0
    %1072 = vmatpush2.bf16.msra.mxu0 0
    %1073 = vmatprep.mubr.bf16.mxu0 0
    %1074 = vmatmul.mubr.bf16.gmra.mxu0 %v999
    %v1075 = vpop.f32.mrf.mxu0
    %v1076 = vadd.f32 %v527, %v1075
    %v1077 = vpop.f32.mrf.mxu0
    %v1078 = vpop.f32.mrf.mxu0
    %v1079 = vpop.f32.mrf.mxu0
    %1080 = vdwg.mxu0
    %1081 = vmatprep.subr.bf16.mxu0 0
    %1082 = vmatpush1.bf16.msra.mxu0 0
    %1083 = vmatprep.subr.bf16.mxu0 0
    %1084 = vmatpush1.bf16.msra.mxu0 0
    %1085 = vmatprep.subr.bf16.mxu0 0
    %1086 = vmatpush1.bf16.msra.mxu0 0
    %1087 = vmatprep.subr.bf16.mxu0 0
    %1088 = vmatpush1.bf16.msra.mxu0 0
    %1089 = vmatprep.subr.bf16.mxu0 0
    %1090 = vmatpush1.bf16.msra.mxu0 0
    %1091 = vmatprep.subr.bf16.mxu0 0
    %1092 = vmatpush1.bf16.msra.mxu0 0
    %1093 = vmatprep.subr.bf16.mxu0 0
    %1094 = vmatpush1.bf16.msra.mxu0 %v595
    %1095 = vmatprep.subr.bf16.mxu0 0
    %1096 = vmatpush1.bf16.msra.mxu0 %v594
    %1097 = vmatprep.subr.bf16.mxu0 0
    %1098 = vmatpush2.bf16.msra.mxu0 0
    %1099 = vmatprep.subr.bf16.mxu0 0
    %1100 = vmatpush2.bf16.msra.mxu0 0
    %1101 = vmatprep.subr.bf16.mxu0 0
    %1102 = vmatpush2.bf16.msra.mxu0 0
    %1103 = vmatprep.subr.bf16.mxu0 0
    %1104 = vmatpush2.bf16.msra.mxu0 0
    %1105 = vmatprep.subr.bf16.mxu0 0
    %1106 = vmatpush2.bf16.msra.mxu0 0
    %1107 = vmatprep.subr.bf16.mxu0 0
    %1108 = vmatpush2.bf16.msra.mxu0 0
    %1109 = vmatprep.subr.bf16.mxu0 0
    %1110 = vmatpush2.bf16.msra.mxu0 0
    %1111 = vmatprep.subr.bf16.mxu0 0
    %1112 = vmatpush2.bf16.msra.mxu0 0
    %1113 = vmatprep.mubr.bf16.mxu0 0
    %1114 = vmatmul.mubr.bf16.gmra.mxu0 %v929
    %v1115 = vpop.f32.mrf.mxu0
    %v1116 = vadd.f32 0.0, %v1115
    %v1117 = vpop.f32.mrf.mxu0
    %v1118 = vpop.f32.mrf.mxu0
    %v1119 = vpop.f32.mrf.mxu0
    %1120 = vdwg.mxu0
    %v1121 = vadd.f32 %v479, %v1116
    %v1122 = vmul.f32 %v1121, 0.5
    %v1123 = vsel %vm75, %v1121, %v1122
    %v1124 = vtanh.pop %v1123
    %v1125 = vmul.f32 %v1124, 0.5
    %v1126 = vadd.f32 %v1125, 0.5
    %v1127 = vsel %vm75, %v1124, %v1126
    %v1128 = vmul.f32 %v1127, %v917
    %1130 = vrot.lane.b32.xlu0 %v1127, 64
    %v1131 = vpop.permute.xlu0 %1130
    %v1133 = vmul.f32 %v1127, %v1131
    %1135 = vrot.lane.b32.xlu0 %v1133, 32
    %v1136 = vpop.permute.xlu0 %1135
    %v1138 = vadd.f32 %v1128, %v1136
    %v1139 = vtanh.pop %v1138
    %1141 = vrot.lane.b32.xlu0 %v1139, 64
    %v1142 = vpop.permute.xlu0 %1141
    %v1144 = vmul.f32 %v1127, %v1142
    %v1145 = vpack.c.bf16 %v1144, %v1144
    %1147 = vrot.lane.b32.xlu0 %v1145, 32
    %v1148 = vpop.permute.xlu0 %1147
    %v1150 = vsel %vm541, %v1148, 0
    %1152 = vmatprep.subr.bf16.mxu0 0
    %1153 = vmatpush1.bf16.msra.mxu0 0
    %1154 = vmatprep.subr.bf16.mxu0 0
    %1155 = vmatpush1.bf16.msra.mxu0 0
    %1156 = vmatprep.subr.bf16.mxu0 0
    %1157 = vmatpush1.bf16.msra.mxu0 0
    %1158 = vmatprep.subr.bf16.mxu0 0
    %1159 = vmatpush1.bf16.msra.mxu0 0
    %1160 = vmatprep.subr.bf16.mxu0 0
    %1161 = vmatpush1.bf16.msra.mxu0 0
    %1162 = vmatprep.subr.bf16.mxu0 0
    %1163 = vmatpush1.bf16.msra.mxu0 0
    %1164 = vmatprep.subr.bf16.mxu0 0
    %1165 = vmatpush1.bf16.msra.mxu0 %v682
    %1166 = vmatprep.subr.bf16.mxu0 0
    %1167 = vmatpush1.bf16.msra.mxu0 %v681
    %1168 = vmatprep.subr.bf16.mxu0 0
    %1169 = vmatpush2.bf16.msra.mxu0 0
    %1170 = vmatprep.subr.bf16.mxu0 0
    %1171 = vmatpush2.bf16.msra.mxu0 0
    %1172 = vmatprep.subr.bf16.mxu0 0
    %1173 = vmatpush2.bf16.msra.mxu0 0
    %1174 = vmatprep.subr.bf16.mxu0 0
    %1175 = vmatpush2.bf16.msra.mxu0 0
    %1176 = vmatprep.subr.bf16.mxu0 0
    %1177 = vmatpush2.bf16.msra.mxu0 0
    %1178 = vmatprep.subr.bf16.mxu0 0
    %1179 = vmatpush2.bf16.msra.mxu0 0
    %1180 = vmatprep.subr.bf16.mxu0 0
    %1181 = vmatpush2.bf16.msra.mxu0 0
    %1182 = vmatprep.subr.bf16.mxu0 0
    %1183 = vmatpush2.bf16.msra.mxu0 0
    %1184 = vmatprep.mubr.bf16.mxu0 0
    %1185 = vmatmul.mubr.bf16.gmra.mxu0 %v1150
    %v1186 = vpop.f32.mrf.mxu0
    %v1187 = vadd.f32 %v1076, %v1186
    %v1188 = vpop.f32.mrf.mxu0
    %v1189 = vpop.f32.mrf.mxu0
    %v1190 = vpop.f32.mrf.mxu0
    %1191 = vdwg.mxu0
    %v1192 = vmul.f32 %v1187, 0.5
    %v1193 = vsel %vm75, %v1187, %v1192
    %v1194 = vtanh.pop %v1193
    %v1195 = vmul.f32 %v1194, 0.5
    %v1196 = vadd.f32 %v1195, 0.5
    %v1197 = vsel %vm75, %v1194, %v1196
    %v1198 = vmul.f32 %v1197, %v987
    %1200 = vrot.lane.b32.xlu0 %v1197, 64
    %v1201 = vpop.permute.xlu0 %1200
    %v1203 = vmul.f32 %v1197, %v1201
    %1205 = vrot.lane.b32.xlu0 %v1203, 32
    %v1206 = vpop.permute.xlu0 %1205
    %v1208 = vadd.f32 %v1198, %v1206
    %v1209 = vtanh.pop %v1208
    %1211 = vrot.lane.b32.xlu0 %v1209, 64
    %v1212 = vpop.permute.xlu0 %1211
    %v1214 = vmul.f32 %v1197, %v1212
    %v1215 = vpack.c.bf16 %v1214, %v1214
    %1217 = vrot.lane.b32.xlu0 %v1215, 32
    %v1218 = vpop.permute.xlu0 %1217
    %v1220 = vsel %vm541, %v1218, 0
    %1222 = vmatprep.subr.bf16.mxu0 0
    %1223 = vmatpush1.bf16.msra.mxu0 0
    %1224 = vmatprep.subr.bf16.mxu0 0
    %1225 = vmatpush1.bf16.msra.mxu0 0
    %1226 = vmatprep.subr.bf16.mxu0 0
    %1227 = vmatpush1.bf16.msra.mxu0 0
    %1228 = vmatprep.subr.bf16.mxu0 0
    %1229 = vmatpush1.bf16.msra.mxu0 0
    %1230 = vmatprep.subr.bf16.mxu0 0
    %1231 = vmatpush1.bf16.msra.mxu0 0
    %1232 = vmatprep.subr.bf16.mxu0 0
    %1233 = vmatpush1.bf16.msra.mxu0 0
    %1234 = vmatprep.subr.bf16.mxu0 0
    %1235 = vmatpush1.bf16.msra.mxu0 %v774
    %1236 = vmatprep.subr.bf16.mxu0 0
    %1237 = vmatpush1.bf16.msra.mxu0 %v773
    %1238 = vmatprep.subr.bf16.mxu0 0
    %1239 = vmatpush2.bf16.msra.mxu0 0
    %1240 = vmatprep.subr.bf16.mxu0 0
    %1241 = vmatpush2.bf16.msra.mxu0 0
    %1242 = vmatprep.subr.bf16.mxu0 0
    %1243 = vmatpush2.bf16.msra.mxu0 0
    %1244 = vmatprep.subr.bf16.mxu0 0
    %1245 = vmatpush2.bf16.msra.mxu0 0
    %1246 = vmatprep.subr.bf16.mxu0 0
    %1247 = vmatpush2.bf16.msra.mxu0 0
    %1248 = vmatprep.subr.bf16.mxu0 0
    %1249 = vmatpush2.bf16.msra.mxu0 0
    %1250 = vmatprep.subr.bf16.mxu0 0
    %1251 = vmatpush2.bf16.msra.mxu0 0
    %1252 = vmatprep.subr.bf16.mxu0 0
    %1253 = vmatpush2.bf16.msra.mxu0 0
    %1254 = vmatprep.mubr.bf16.mxu0 0
    %1255 = vmatmul.mubr.bf16.gmra.mxu0 %v1220
    %v1256 = vpop.f32.mrf.mxu0
    %v1257 = vadd.f32 %v760, %v1256
    %v1258 = vpop.f32.mrf.mxu0
    %v1259 = vpop.f32.mrf.mxu0
    %v1260 = vpop.f32.mrf.mxu0
    %1261 = vdwg.mxu0
    %1262 = vmatprep.subr.bf16.mxu0 0
    %1263 = vmatpush1.bf16.msra.mxu0 0
    %1264 = vmatprep.subr.bf16.mxu0 0
    %1265 = vmatpush1.bf16.msra.mxu0 0
    %1266 = vmatprep.subr.bf16.mxu0 0
    %1267 = vmatpush1.bf16.msra.mxu0 0
    %1268 = vmatprep.subr.bf16.mxu0 0
    %1269 = vmatpush1.bf16.msra.mxu0 0
    %1270 = vmatprep.subr.bf16.mxu0 0
    %1271 = vmatpush1.bf16.msra.mxu0 0
    %1272 = vmatprep.subr.bf16.mxu0 0
    %1273 = vmatpush1.bf16.msra.mxu0 0
    %1274 = vmatprep.subr.bf16.mxu0 0
    %1275 = vmatpush1.bf16.msra.mxu0 %v538
    %1276 = vmatprep.subr.bf16.mxu0 0
    %1277 = vmatpush1.bf16.msra.mxu0 %v537
    %1278 = vmatprep.subr.bf16.mxu0 0
    %1279 = vmatpush2.bf16.msra.mxu0 0
    %1280 = vmatprep.subr.bf16.mxu0 0
    %1281 = vmatpush2.bf16.msra.mxu0 0
    %1282 = vmatprep.subr.bf16.mxu0 0
    %1283 = vmatpush2.bf16.msra.mxu0 0
    %1284 = vmatprep.subr.bf16.mxu0 0
    %1285 = vmatpush2.bf16.msra.mxu0 0
    %1286 = vmatprep.subr.bf16.mxu0 0
    %1287 = vmatpush2.bf16.msra.mxu0 0
    %1288 = vmatprep.subr.bf16.mxu0 0
    %1289 = vmatpush2.bf16.msra.mxu0 0
    %1290 = vmatprep.subr.bf16.mxu0 0
    %1291 = vmatpush2.bf16.msra.mxu0 0
    %1292 = vmatprep.subr.bf16.mxu0 0
    %1293 = vmatpush2.bf16.msra.mxu0 0
    %1294 = vmatprep.mubr.bf16.mxu0 0
    %1295 = vmatmul.mubr.bf16.gmra.mxu0 %v1220
    %v1296 = vpop.f32.mrf.mxu0
    %v1297 = vadd.f32 %v527, %v1296
    %v1298 = vpop.f32.mrf.mxu0
    %v1299 = vpop.f32.mrf.mxu0
    %v1300 = vpop.f32.mrf.mxu0
    %1301 = vdwg.mxu0
    %1302 = vmatprep.subr.bf16.mxu0 0
    %1303 = vmatpush1.bf16.msra.mxu0 0
    %1304 = vmatprep.subr.bf16.mxu0 0
    %1305 = vmatpush1.bf16.msra.mxu0 0
    %1306 = vmatprep.subr.bf16.mxu0 0
    %1307 = vmatpush1.bf16.msra.mxu0 0
    %1308 = vmatprep.subr.bf16.mxu0 0
    %1309 = vmatpush1.bf16.msra.mxu0 0
    %1310 = vmatprep.subr.bf16.mxu0 0
    %1311 = vmatpush1.bf16.msra.mxu0 0
    %1312 = vmatprep.subr.bf16.mxu0 0
    %1313 = vmatpush1.bf16.msra.mxu0 0
    %1314 = vmatprep.subr.bf16.mxu0 0
    %1315 = vmatpush1.bf16.msra.mxu0 %v595
    %1316 = vmatprep.subr.bf16.mxu0 0
    %1317 = vmatpush1.bf16.msra.mxu0 %v594
    %1318 = vmatprep.subr.bf16.mxu0 0
    %1319 = vmatpush2.bf16.msra.mxu0 0
    %1320 = vmatprep.subr.bf16.mxu0 0
    %1321 = vmatpush2.bf16.msra.mxu0 0
    %1322 = vmatprep.subr.bf16.mxu0 0
    %1323 = vmatpush2.bf16.msra.mxu0 0
    %1324 = vmatprep.subr.bf16.mxu0 0
    %1325 = vmatpush2.bf16.msra.mxu0 0
    %1326 = vmatprep.subr.bf16.mxu0 0
    %1327 = vmatpush2.bf16.msra.mxu0 0
    %1328 = vmatprep.subr.bf16.mxu0 0
    %1329 = vmatpush2.bf16.msra.mxu0 0
    %1330 = vmatprep.subr.bf16.mxu0 0
    %1331 = vmatpush2.bf16.msra.mxu0 0
    %1332 = vmatprep.subr.bf16.mxu0 0
    %1333 = vmatpush2.bf16.msra.mxu0 0
    %1334 = vmatprep.mubr.bf16.mxu0 0
    %1335 = vmatmul.mubr.bf16.gmra.mxu0 %v1150
    %v1336 = vpop.f32.mrf.mxu0
    %v1337 = vadd.f32 0.0, %v1336
    %v1338 = vpop.f32.mrf.mxu0
    %v1339 = vpop.f32.mrf.mxu0
    %v1340 = vpop.f32.mrf.mxu0
    %1341 = vdwg.mxu0
    %v1342 = vadd.f32 %v482, %v1337
    %v1343 = vmul.f32 %v1342, 0.5
    %v1344 = vsel %vm75, %v1342, %v1343
    %v1345 = vtanh.pop %v1344
    %v1346 = vmul.f32 %v1345, 0.5
    %v1347 = vadd.f32 %v1346, 0.5
    %v1348 = vsel %vm75, %v1345, %v1347
    %v1349 = vmul.f32 %v1348, %v1138
    %1351 = vrot.lane.b32.xlu0 %v1348, 64
    %v1352 = vpop.permute.xlu0 %1351
    %v1354 = vmul.f32 %v1348, %v1352
    %1356 = vrot.lane.b32.xlu0 %v1354, 32
    %v1357 = vpop.permute.xlu0 %1356
    %v1359 = vadd.f32 %v1349, %v1357
    %v1360 = vtanh.pop %v1359
    %1362 = vrot.lane.b32.xlu0 %v1360, 64
    %v1363 = vpop.permute.xlu0 %1362
    %v1365 = vmul.f32 %v1348, %v1363
    %v1366 = vpack.c.bf16 %v1365, %v1365
    %1368 = vrot.lane.b32.xlu0 %v1366, 32
    %v1369 = vpop.permute.xlu0 %1368
    %v1371 = vsel %vm541, %v1369, 0
    %1373 = vmatprep.subr.bf16.mxu0 0
    %1374 = vmatpush1.bf16.msra.mxu0 0
    %1375 = vmatprep.subr.bf16.mxu0 0
    %1376 = vmatpush1.bf16.msra.mxu0 0
    %1377 = vmatprep.subr.bf16.mxu0 0
    %1378 = vmatpush1.bf16.msra.mxu0 0
    %1379 = vmatprep.subr.bf16.mxu0 0
    %1380 = vmatpush1.bf16.msra.mxu0 0
    %1381 = vmatprep.subr.bf16.mxu0 0
    %1382 = vmatpush1.bf16.msra.mxu0 0
    %1383 = vmatprep.subr.bf16.mxu0 0
    %1384 = vmatpush1.bf16.msra.mxu0 0
    %1385 = vmatprep.subr.bf16.mxu0 0
    %1386 = vmatpush1.bf16.msra.mxu0 %v682
    %1387 = vmatprep.subr.bf16.mxu0 0
    %1388 = vmatpush1.bf16.msra.mxu0 %v681
    %1389 = vmatprep.subr.bf16.mxu0 0
    %1390 = vmatpush2.bf16.msra.mxu0 0
    %1391 = vmatprep.subr.bf16.mxu0 0
    %1392 = vmatpush2.bf16.msra.mxu0 0
    %1393 = vmatprep.subr.bf16.mxu0 0
    %1394 = vmatpush2.bf16.msra.mxu0 0
    %1395 = vmatprep.subr.bf16.mxu0 0
    %1396 = vmatpush2.bf16.msra.mxu0 0
    %1397 = vmatprep.subr.bf16.mxu0 0
    %1398 = vmatpush2.bf16.msra.mxu0 0
    %1399 = vmatprep.subr.bf16.mxu0 0
    %1400 = vmatpush2.bf16.msra.mxu0 0
    %1401 = vmatprep.subr.bf16.mxu0 0
    %1402 = vmatpush2.bf16.msra.mxu0 0
    %1403 = vmatprep.subr.bf16.mxu0 0
    %1404 = vmatpush2.bf16.msra.mxu0 0
    %1405 = vmatprep.mubr.bf16.mxu0 0
    %1406 = vmatmul.mubr.bf16.gmra.mxu0 %v1371
    %v1407 = vpop.f32.mrf.mxu0
    %v1408 = vadd.f32 %v1297, %v1407
    %v1409 = vpop.f32.mrf.mxu0
    %v1410 = vpop.f32.mrf.mxu0
    %v1411 = vpop.f32.mrf.mxu0
    %1412 = vdwg.mxu0
    %v1413 = vmul.f32 %v1408, 0.5
    %v1414 = vsel %vm75, %v1408, %v1413
    %v1415 = vtanh.pop %v1414
    %v1416 = vmul.f32 %v1415, 0.5
    %v1417 = vadd.f32 %v1416, 0.5
    %v1418 = vsel %vm75, %v1415, %v1417
    %v1419 = vmul.f32 %v1418, %v1208
    %1421 = vrot.lane.b32.xlu0 %v1418, 64
    %v1422 = vpop.permute.xlu0 %1421
    %v1424 = vmul.f32 %v1418, %v1422
    %1426 = vrot.lane.b32.xlu0 %v1424, 32
    %v1427 = vpop.permute.xlu0 %1426
    %v1429 = vadd.f32 %v1419, %v1427
    %v1430 = vtanh.pop %v1429
    %1432 = vrot.lane.b32.xlu0 %v1430, 64
    %v1433 = vpop.permute.xlu0 %1432
    %v1435 = vmul.f32 %v1418, %v1433
    %v1436 = vpack.c.bf16 %v1435, %v1435
    %1438 = vrot.lane.b32.xlu0 %v1436, 32
    %v1439 = vpop.permute.xlu0 %1438
    %v1441 = vsel %vm541, %v1439, 0
    %1443 = vmatprep.subr.bf16.mxu0 0
    %1444 = vmatpush1.bf16.msra.mxu0 0
    %1445 = vmatprep.subr.bf16.mxu0 0
    %1446 = vmatpush1.bf16.msra.mxu0 0
    %1447 = vmatprep.subr.bf16.mxu0 0
    %1448 = vmatpush1.bf16.msra.mxu0 0
    %1449 = vmatprep.subr.bf16.mxu0 0
    %1450 = vmatpush1.bf16.msra.mxu0 0
    %1451 = vmatprep.subr.bf16.mxu0 0
    %1452 = vmatpush1.bf16.msra.mxu0 0
    %1453 = vmatprep.subr.bf16.mxu0 0
    %1454 = vmatpush1.bf16.msra.mxu0 0
    %1455 = vmatprep.subr.bf16.mxu0 0
    %1456 = vmatpush1.bf16.msra.mxu0 %v774
    %1457 = vmatprep.subr.bf16.mxu0 0
    %1458 = vmatpush1.bf16.msra.mxu0 %v773
    %1459 = vmatprep.subr.bf16.mxu0 0
    %1460 = vmatpush2.bf16.msra.mxu0 0
    %1461 = vmatprep.subr.bf16.mxu0 0
    %1462 = vmatpush2.bf16.msra.mxu0 0
    %1463 = vmatprep.subr.bf16.mxu0 0
    %1464 = vmatpush2.bf16.msra.mxu0 0
    %1465 = vmatprep.subr.bf16.mxu0 0
    %1466 = vmatpush2.bf16.msra.mxu0 0
    %1467 = vmatprep.subr.bf16.mxu0 0
    %1468 = vmatpush2.bf16.msra.mxu0 0
    %1469 = vmatprep.subr.bf16.mxu0 0
    %1470 = vmatpush2.bf16.msra.mxu0 0
    %1471 = vmatprep.subr.bf16.mxu0 0
    %1472 = vmatpush2.bf16.msra.mxu0 0
    %1473 = vmatprep.subr.bf16.mxu0 0
    %1474 = vmatpush2.bf16.msra.mxu0 0
    %1475 = vmatprep.mubr.bf16.mxu0 0
    %1476 = vmatmul.mubr.bf16.gmra.mxu0 %v1441
    %v1477 = vpop.f32.mrf.mxu0
    %v1478 = vadd.f32 %v760, %v1477
    %v1479 = vpop.f32.mrf.mxu0
    %v1480 = vpop.f32.mrf.mxu0
    %v1481 = vpop.f32.mrf.mxu0
    %1482 = vdwg.mxu0
    %v1484 = vlaneseq
    %v1485 = vshrl.u32 %v1484, 7
    %v1486 = vsub.s32 0, %v1485
    %v1487 = vrot.slane %v521, %v1486
    %v1493 = vunpack.c.l.b16 %v517
    %v1494 = vunpack.c.l.b16 %v518
    %v1495 = vunpack.c.l.b16 %v519
    %v1496 = vunpack.c.l.b16 %v520
    %v1497 = vpack.c.b16 %v1494, %v1493
    %v1498 = vpack.c.b16 %v1496, %v1495
    %1501 = vmatprep.subr.bf16.mxu0 0
    %1502 = vmatpush1.bf16.msra.mxu0 0
    %1503 = vmatprep.subr.bf16.mxu0 0
    %1504 = vmatpush1.bf16.msra.mxu0 0
    %1505 = vmatprep.subr.bf16.mxu0 0
    %1506 = vmatpush1.bf16.msra.mxu0 0
    %1507 = vmatprep.subr.bf16.mxu0 0
    %1508 = vmatpush1.bf16.msra.mxu0 0
    %1509 = vmatprep.subr.bf16.mxu0 0
    %1510 = vmatpush1.bf16.msra.mxu0 0
    %1511 = vmatprep.subr.bf16.mxu0 0
    %1512 = vmatpush1.bf16.msra.mxu0 0
    %1513 = vmatprep.subr.bf16.mxu0 0
    %1514 = vmatpush1.bf16.msra.mxu0 %v1498
    %1515 = vmatprep.subr.bf16.mxu0 0
    %1516 = vmatpush1.bf16.msra.mxu0 %v1497
    %1517 = vmatprep.subr.bf16.mxu0 0
    %1518 = vmatpush2.bf16.msra.mxu0 0
    %1519 = vmatprep.subr.bf16.mxu0 0
    %1520 = vmatpush2.bf16.msra.mxu0 0
    %1521 = vmatprep.subr.bf16.mxu0 0
    %1522 = vmatpush2.bf16.msra.mxu0 0
    %1523 = vmatprep.subr.bf16.mxu0 0
    %1524 = vmatpush2.bf16.msra.mxu0 0
    %1525 = vmatprep.subr.bf16.mxu0 0
    %1526 = vmatpush2.bf16.msra.mxu0 0
    %1527 = vmatprep.subr.bf16.mxu0 0
    %1528 = vmatpush2.bf16.msra.mxu0 0
    %1529 = vmatprep.subr.bf16.mxu0 0
    %1530 = vmatpush2.bf16.msra.mxu0 0
    %1531 = vmatprep.subr.bf16.mxu0 0
    %1532 = vmatpush2.bf16.msra.mxu0 0
    %1533 = vmatprep.mubr.bf16.mxu0 0
    %1534 = vmatmul.mubr.bf16.gmra.mxu0 %v1441
    %v1535 = vpop.f32.mrf.mxu0
    %v1536 = vadd.f32 %v1487, %v1535
    %v1537 = vpop.f32.mrf.mxu0
    %v1538 = vpop.f32.mrf.mxu0
    %v1539 = vpop.f32.mrf.mxu0
    %1540 = vdwg.mxu0
    %v1545 = vunpack.c.l.b16 %v509
    %v1546 = vunpack.c.l.b16 %v510
    %v1547 = vunpack.c.l.b16 %v511
    %v1548 = vunpack.c.l.b16 %v512
    %v1549 = vpack.c.b16 %v1546, %v1545
    %v1550 = vpack.c.b16 %v1548, %v1547
    %1553 = vmatprep.subr.bf16.mxu0 0
    %1554 = vmatpush1.bf16.msra.mxu0 0
    %1555 = vmatprep.subr.bf16.mxu0 0
    %1556 = vmatpush1.bf16.msra.mxu0 0
    %1557 = vmatprep.subr.bf16.mxu0 0
    %1558 = vmatpush1.bf16.msra.mxu0 0
    %1559 = vmatprep.subr.bf16.mxu0 0
    %1560 = vmatpush1.bf16.msra.mxu0 0
    %1561 = vmatprep.subr.bf16.mxu0 0
    %1562 = vmatpush1.bf16.msra.mxu0 0
    %1563 = vmatprep.subr.bf16.mxu0 0
    %1564 = vmatpush1.bf16.msra.mxu0 0
    %1565 = vmatprep.subr.bf16.mxu0 0
    %1566 = vmatpush1.bf16.msra.mxu0 %v1550
    %1567 = vmatprep.subr.bf16.mxu0 0
    %1568 = vmatpush1.bf16.msra.mxu0 %v1549
    %1569 = vmatprep.subr.bf16.mxu0 0
    %1570 = vmatpush2.bf16.msra.mxu0 0
    %1571 = vmatprep.subr.bf16.mxu0 0
    %1572 = vmatpush2.bf16.msra.mxu0 0
    %1573 = vmatprep.subr.bf16.mxu0 0
    %1574 = vmatpush2.bf16.msra.mxu0 0
    %1575 = vmatprep.subr.bf16.mxu0 0
    %1576 = vmatpush2.bf16.msra.mxu0 0
    %1577 = vmatprep.subr.bf16.mxu0 0
    %1578 = vmatpush2.bf16.msra.mxu0 0
    %1579 = vmatprep.subr.bf16.mxu0 0
    %1580 = vmatpush2.bf16.msra.mxu0 0
    %1581 = vmatprep.subr.bf16.mxu0 0
    %1582 = vmatpush2.bf16.msra.mxu0 0
    %1583 = vmatprep.subr.bf16.mxu0 0
    %1584 = vmatpush2.bf16.msra.mxu0 0
    %1585 = vmatprep.mubr.bf16.mxu0 0
    %1586 = vmatmul.mubr.bf16.gmra.mxu0 %v1371
    %v1587 = vpop.f32.mrf.mxu0
    %v1588 = vadd.f32 0.0, %v1587
    %v1589 = vpop.f32.mrf.mxu0
    %v1590 = vpop.f32.mrf.mxu0
    %v1591 = vpop.f32.mrf.mxu0
    %1592 = vdwg.mxu0
    %v1593 = vadd.f32 %v815, %v1588
    %v1594 = vmul.f32 %v1593, 0.5
    %v1595 = vsel %vm75, %v1593, %v1594
    %v1596 = vtanh.pop %v1595
    %v1597 = vmul.f32 %v1596, 0.5
    %v1598 = vadd.f32 %v1597, 0.5
    %v1599 = vsel %vm75, %v1596, %v1598
    %v1600 = vmul.f32 %v1599, %v1359
    %1602 = vrot.lane.b32.xlu0 %v1599, 64
    %v1603 = vpop.permute.xlu0 %1602
    %v1605 = vmul.f32 %v1599, %v1603
    %1607 = vrot.lane.b32.xlu0 %v1605, 32
    %v1608 = vpop.permute.xlu0 %1607
    %v1610 = vadd.f32 %v1600, %v1608
    %v1611 = vtanh.pop %v1610
    %1613 = vrot.lane.b32.xlu0 %v1611, 64
    %v1614 = vpop.permute.xlu0 %1613
    %v1616 = vmul.f32 %v1599, %v1614
    %v1617 = vpack.c.bf16 %v1616, %v1616
    %1619 = vrot.lane.b32.xlu0 %v1617, 32
    %v1620 = vpop.permute.xlu0 %1619
    %v1625 = vunpack.c.l.b16 %v513
    %v1626 = vunpack.c.l.b16 %v514
    %v1627 = vunpack.c.l.b16 %v515
    %v1628 = vunpack.c.l.b16 %v516
    %v1629 = vpack.c.b16 %v1626, %v1625
    %v1630 = vpack.c.b16 %v1628, %v1627
    %v1634 = vsel %vm541, %v1620, 0
    %1636 = vmatprep.subr.bf16.mxu0 0
    %1637 = vmatpush1.bf16.msra.mxu0 0
    %1638 = vmatprep.subr.bf16.mxu0 0
    %1639 = vmatpush1.bf16.msra.mxu0 0
    %1640 = vmatprep.subr.bf16.mxu0 0
    %1641 = vmatpush1.bf16.msra.mxu0 0
    %1642 = vmatprep.subr.bf16.mxu0 0
    %1643 = vmatpush1.bf16.msra.mxu0 0
    %1644 = vmatprep.subr.bf16.mxu0 0
    %1645 = vmatpush1.bf16.msra.mxu0 0
    %1646 = vmatprep.subr.bf16.mxu0 0
    %1647 = vmatpush1.bf16.msra.mxu0 0
    %1648 = vmatprep.subr.bf16.mxu0 0
    %1649 = vmatpush1.bf16.msra.mxu0 %v1630
    %1650 = vmatprep.subr.bf16.mxu0 0
    %1651 = vmatpush1.bf16.msra.mxu0 %v1629
    %1652 = vmatprep.subr.bf16.mxu0 0
    %1653 = vmatpush2.bf16.msra.mxu0 0
    %1654 = vmatprep.subr.bf16.mxu0 0
    %1655 = vmatpush2.bf16.msra.mxu0 0
    %1656 = vmatprep.subr.bf16.mxu0 0
    %1657 = vmatpush2.bf16.msra.mxu0 0
    %1658 = vmatprep.subr.bf16.mxu0 0
    %1659 = vmatpush2.bf16.msra.mxu0 0
    %1660 = vmatprep.subr.bf16.mxu0 0
    %1661 = vmatpush2.bf16.msra.mxu0 0
    %1662 = vmatprep.subr.bf16.mxu0 0
    %1663 = vmatpush2.bf16.msra.mxu0 0
    %1664 = vmatprep.subr.bf16.mxu0 0
    %1665 = vmatpush2.bf16.msra.mxu0 0
    %1666 = vmatprep.subr.bf16.mxu0 0
    %1667 = vmatpush2.bf16.msra.mxu0 0
    %1668 = vmatprep.mubr.bf16.mxu0 0
    %1669 = vmatmul.mubr.bf16.gmra.mxu0 %v1634
    %v1670 = vpop.f32.mrf.mxu0
    %v1671 = vadd.f32 %v1536, %v1670
    %v1672 = vpop.f32.mrf.mxu0
    %v1673 = vpop.f32.mrf.mxu0
    %v1674 = vpop.f32.mrf.mxu0
    %1675 = vdwg.mxu0
    %v1676 = vmul.f32 %v1671, 0.5
    %v1677 = vsel %vm75, %v1671, %v1676
    %v1678 = vtanh.pop %v1677
    %v1679 = vmul.f32 %v1678, 0.5
    %v1680 = vadd.f32 %v1679, 0.5
    %v1681 = vsel %vm75, %v1678, %v1680
    %v1682 = vmul.f32 %v1681, %v1429
    %1684 = vrot.lane.b32.xlu0 %v1681, 64
    %v1685 = vpop.permute.xlu0 %1684
    %v1687 = vmul.f32 %v1681, %v1685
    %1689 = vrot.lane.b32.xlu0 %v1687, 32
    %v1690 = vpop.permute.xlu0 %1689
    %v1692 = vadd.f32 %v1682, %v1690
    %v1693 = vtanh.pop %v1692
    %1695 = vrot.lane.b32.xlu0 %v1693, 64
    %v1696 = vpop.permute.xlu0 %1695
    %v1698 = vmul.f32 %v1681, %v1696
    %v1699 = vpack.c.bf16 %v1698, %v1698
    %1701 = vrot.lane.b32.xlu0 %v1699, 32
    %v1702 = vpop.permute.xlu0 %1701
    %v1704 = vsel %vm541, %v1702, 0
    %1706 = vmatprep.subr.bf16.mxu0 0
    %1707 = vmatpush1.bf16.msra.mxu0 0
    %1708 = vmatprep.subr.bf16.mxu0 0
    %1709 = vmatpush1.bf16.msra.mxu0 0
    %1710 = vmatprep.subr.bf16.mxu0 0
    %1711 = vmatpush1.bf16.msra.mxu0 0
    %1712 = vmatprep.subr.bf16.mxu0 0
    %1713 = vmatpush1.bf16.msra.mxu0 0
    %1714 = vmatprep.subr.bf16.mxu0 0
    %1715 = vmatpush1.bf16.msra.mxu0 0
    %1716 = vmatprep.subr.bf16.mxu0 0
    %1717 = vmatpush1.bf16.msra.mxu0 0
    %1718 = vmatprep.subr.bf16.mxu0 0
    %1719 = vmatpush1.bf16.msra.mxu0 %v1498
    %1720 = vmatprep.subr.bf16.mxu0 0
    %1721 = vmatpush1.bf16.msra.mxu0 %v1497
    %1722 = vmatprep.subr.bf16.mxu0 0
    %1723 = vmatpush2.bf16.msra.mxu0 0
    %1724 = vmatprep.subr.bf16.mxu0 0
    %1725 = vmatpush2.bf16.msra.mxu0 0
    %1726 = vmatprep.subr.bf16.mxu0 0
    %1727 = vmatpush2.bf16.msra.mxu0 0
    %1728 = vmatprep.subr.bf16.mxu0 0
    %1729 = vmatpush2.bf16.msra.mxu0 0
    %1730 = vmatprep.subr.bf16.mxu0 0
    %1731 = vmatpush2.bf16.msra.mxu0 0
    %1732 = vmatprep.subr.bf16.mxu0 0
    %1733 = vmatpush2.bf16.msra.mxu0 0
    %1734 = vmatprep.subr.bf16.mxu0 0
    %1735 = vmatpush2.bf16.msra.mxu0 0
    %1736 = vmatprep.subr.bf16.mxu0 0
    %1737 = vmatpush2.bf16.msra.mxu0 0
    %1738 = vmatprep.mubr.bf16.mxu0 0
    %1739 = vmatmul.mubr.bf16.gmra.mxu0 %v1704
    %v1740 = vpop.f32.mrf.mxu0
    %v1741 = vadd.f32 %v1487, %v1740
    %v1742 = vpop.f32.mrf.mxu0
    %v1743 = vpop.f32.mrf.mxu0
    %v1744 = vpop.f32.mrf.mxu0
    %1745 = vdwg.mxu0
    %1746 = vmatprep.subr.bf16.mxu0 0
    %1747 = vmatpush1.bf16.msra.mxu0 0
    %1748 = vmatprep.subr.bf16.mxu0 0
    %1749 = vmatpush1.bf16.msra.mxu0 0
    %1750 = vmatprep.subr.bf16.mxu0 0
    %1751 = vmatpush1.bf16.msra.mxu0 0
    %1752 = vmatprep.subr.bf16.mxu0 0
    %1753 = vmatpush1.bf16.msra.mxu0 0
    %1754 = vmatprep.subr.bf16.mxu0 0
    %1755 = vmatpush1.bf16.msra.mxu0 0
    %1756 = vmatprep.subr.bf16.mxu0 0
    %1757 = vmatpush1.bf16.msra.mxu0 0
    %1758 = vmatprep.subr.bf16.mxu0 0
    %1759 = vmatpush1.bf16.msra.mxu0 %v1550
    %1760 = vmatprep.subr.bf16.mxu0 0
    %1761 = vmatpush1.bf16.msra.mxu0 %v1549
    %1762 = vmatprep.subr.bf16.mxu0 0
    %1763 = vmatpush2.bf16.msra.mxu0 0
    %1764 = vmatprep.subr.bf16.mxu0 0
    %1765 = vmatpush2.bf16.msra.mxu0 0
    %1766 = vmatprep.subr.bf16.mxu0 0
    %1767 = vmatpush2.bf16.msra.mxu0 0
    %1768 = vmatprep.subr.bf16.mxu0 0
    %1769 = vmatpush2.bf16.msra.mxu0 0
    %1770 = vmatprep.subr.bf16.mxu0 0
    %1771 = vmatpush2.bf16.msra.mxu0 0
    %1772 = vmatprep.subr.bf16.mxu0 0
    %1773 = vmatpush2.bf16.msra.mxu0 0
    %1774 = vmatprep.subr.bf16.mxu0 0
    %1775 = vmatpush2.bf16.msra.mxu0 0
    %1776 = vmatprep.subr.bf16.mxu0 0
    %1777 = vmatpush2.bf16.msra.mxu0 0
    %1778 = vmatprep.mubr.bf16.mxu0 0
    %1779 = vmatmul.mubr.bf16.gmra.mxu0 %v1634
    %v1780 = vpop.f32.mrf.mxu0
    %v1781 = vadd.f32 0.0, %v1780
    %v1782 = vpop.f32.mrf.mxu0
    %v1783 = vpop.f32.mrf.mxu0
    %v1784 = vpop.f32.mrf.mxu0
    %1785 = vdwg.mxu0
    %v1786 = vadd.f32 %v1036, %v1781
    %v1787 = vmul.f32 %v1786, 0.5
    %v1788 = vsel %vm75, %v1786, %v1787
    %v1789 = vtanh.pop %v1788
    %v1790 = vmul.f32 %v1789, 0.5
    %v1791 = vadd.f32 %v1790, 0.5
    %v1792 = vsel %vm75, %v1789, %v1791
    %v1793 = vmul.f32 %v1792, %v1610
    %1795 = vrot.lane.b32.xlu0 %v1792, 64
    %v1796 = vpop.permute.xlu0 %1795
    %v1798 = vmul.f32 %v1792, %v1796
    %1800 = vrot.lane.b32.xlu0 %v1798, 32
    %v1801 = vpop.permute.xlu0 %1800
    %v1803 = vadd.f32 %v1793, %v1801
    %v1804 = vtanh.pop %v1803
    %1806 = vrot.lane.b32.xlu0 %v1804, 64
    %v1807 = vpop.permute.xlu0 %1806
    %v1809 = vmul.f32 %v1792, %v1807
    %v1810 = vpack.c.bf16 %v1809, %v1809
    %1812 = vrot.lane.b32.xlu0 %v1810, 32
    %v1813 = vpop.permute.xlu0 %1812
    %v1815 = vsel %vm541, %v1813, 0
    %1817 = vmatprep.subr.bf16.mxu0 0
    %1818 = vmatpush1.bf16.msra.mxu0 0
    %1819 = vmatprep.subr.bf16.mxu0 0
    %1820 = vmatpush1.bf16.msra.mxu0 0
    %1821 = vmatprep.subr.bf16.mxu0 0
    %1822 = vmatpush1.bf16.msra.mxu0 0
    %1823 = vmatprep.subr.bf16.mxu0 0
    %1824 = vmatpush1.bf16.msra.mxu0 0
    %1825 = vmatprep.subr.bf16.mxu0 0
    %1826 = vmatpush1.bf16.msra.mxu0 0
    %1827 = vmatprep.subr.bf16.mxu0 0
    %1828 = vmatpush1.bf16.msra.mxu0 0
    %1829 = vmatprep.subr.bf16.mxu0 0
    %1830 = vmatpush1.bf16.msra.mxu0 %v1630
    %1831 = vmatprep.subr.bf16.mxu0 0
    %1832 = vmatpush1.bf16.msra.mxu0 %v1629
    %1833 = vmatprep.subr.bf16.mxu0 0
    %1834 = vmatpush2.bf16.msra.mxu0 0
    %1835 = vmatprep.subr.bf16.mxu0 0
    %1836 = vmatpush2.bf16.msra.mxu0 0
    %1837 = vmatprep.subr.bf16.mxu0 0
    %1838 = vmatpush2.bf16.msra.mxu0 0
    %1839 = vmatprep.subr.bf16.mxu0 0
    %1840 = vmatpush2.bf16.msra.mxu0 0
    %1841 = vmatprep.subr.bf16.mxu0 0
    %1842 = vmatpush2.bf16.msra.mxu0 0
    %1843 = vmatprep.subr.bf16.mxu0 0
    %1844 = vmatpush2.bf16.msra.mxu0 0
    %1845 = vmatprep.subr.bf16.mxu0 0
    %1846 = vmatpush2.bf16.msra.mxu0 0
    %1847 = vmatprep.subr.bf16.mxu0 0
    %1848 = vmatpush2.bf16.msra.mxu0 0
    %1849 = vmatprep.mubr.bf16.mxu0 0
    %1850 = vmatmul.mubr.bf16.gmra.mxu0 %v1815
    %v1851 = vpop.f32.mrf.mxu0
    %v1852 = vadd.f32 %v1741, %v1851
    %v1853 = vpop.f32.mrf.mxu0
    %v1854 = vpop.f32.mrf.mxu0
    %v1855 = vpop.f32.mrf.mxu0
    %1856 = vdwg.mxu0
    %v1857 = vmul.f32 %v1852, 0.5
    %v1858 = vsel %vm75, %v1852, %v1857
    %v1859 = vtanh.pop %v1858
    %v1860 = vmul.f32 %v1859, 0.5
    %v1861 = vadd.f32 %v1860, 0.5
    %v1862 = vsel %vm75, %v1859, %v1861
    %v1863 = vmul.f32 %v1862, %v1692
    %1865 = vrot.lane.b32.xlu0 %v1862, 64
    %v1866 = vpop.permute.xlu0 %1865
    %v1868 = vmul.f32 %v1862, %v1866
    %1870 = vrot.lane.b32.xlu0 %v1868, 32
    %v1871 = vpop.permute.xlu0 %1870
    %v1873 = vadd.f32 %v1863, %v1871
    %v1874 = vtanh.pop %v1873
    %1876 = vrot.lane.b32.xlu0 %v1874, 64
    %v1877 = vpop.permute.xlu0 %1876
    %v1879 = vmul.f32 %v1862, %v1877
    %v1880 = vpack.c.bf16 %v1879, %v1879
    %1882 = vrot.lane.b32.xlu0 %v1880, 32
    %v1883 = vpop.permute.xlu0 %1882
    %v1885 = vsel %vm541, %v1883, 0
    %1887 = vmatprep.subr.bf16.mxu0 0
    %1888 = vmatpush1.bf16.msra.mxu0 0
    %1889 = vmatprep.subr.bf16.mxu0 0
    %1890 = vmatpush1.bf16.msra.mxu0 0
    %1891 = vmatprep.subr.bf16.mxu0 0
    %1892 = vmatpush1.bf16.msra.mxu0 0
    %1893 = vmatprep.subr.bf16.mxu0 0
    %1894 = vmatpush1.bf16.msra.mxu0 0
    %1895 = vmatprep.subr.bf16.mxu0 0
    %1896 = vmatpush1.bf16.msra.mxu0 0
    %1897 = vmatprep.subr.bf16.mxu0 0
    %1898 = vmatpush1.bf16.msra.mxu0 0
    %1899 = vmatprep.subr.bf16.mxu0 0
    %1900 = vmatpush1.bf16.msra.mxu0 %v1498
    %1901 = vmatprep.subr.bf16.mxu0 0
    %1902 = vmatpush1.bf16.msra.mxu0 %v1497
    %1903 = vmatprep.subr.bf16.mxu0 0
    %1904 = vmatpush2.bf16.msra.mxu0 0
    %1905 = vmatprep.subr.bf16.mxu0 0
    %1906 = vmatpush2.bf16.msra.mxu0 0
    %1907 = vmatprep.subr.bf16.mxu0 0
    %1908 = vmatpush2.bf16.msra.mxu0 0
    %1909 = vmatprep.subr.bf16.mxu0 0
    %1910 = vmatpush2.bf16.msra.mxu0 0
    %1911 = vmatprep.subr.bf16.mxu0 0
    %1912 = vmatpush2.bf16.msra.mxu0 0
    %1913 = vmatprep.subr.bf16.mxu0 0
    %1914 = vmatpush2.bf16.msra.mxu0 0
    %1915 = vmatprep.subr.bf16.mxu0 0
    %1916 = vmatpush2.bf16.msra.mxu0 0
    %1917 = vmatprep.subr.bf16.mxu0 0
    %1918 = vmatpush2.bf16.msra.mxu0 0
    %1919 = vmatprep.mubr.bf16.mxu0 0
    %1920 = vmatmul.mubr.bf16.gmra.mxu0 %v1885
    %v1921 = vpop.f32.mrf.mxu0
    %v1922 = vadd.f32 %v1487, %v1921
    %v1923 = vpop.f32.mrf.mxu0
    %v1924 = vpop.f32.mrf.mxu0
    %v1925 = vpop.f32.mrf.mxu0
    %1926 = vdwg.mxu0
    %1927 = vmatprep.subr.bf16.mxu0 0
    %1928 = vmatpush1.bf16.msra.mxu0 0
    %1929 = vmatprep.subr.bf16.mxu0 0
    %1930 = vmatpush1.bf16.msra.mxu0 0
    %1931 = vmatprep.subr.bf16.mxu0 0
    %1932 = vmatpush1.bf16.msra.mxu0 0
    %1933 = vmatprep.subr.bf16.mxu0 0
    %1934 = vmatpush1.bf16.msra.mxu0 0
    %1935 = vmatprep.subr.bf16.mxu0 0
    %1936 = vmatpush1.bf16.msra.mxu0 0
    %1937 = vmatprep.subr.bf16.mxu0 0
    %1938 = vmatpush1.bf16.msra.mxu0 0
    %1939 = vmatprep.subr.bf16.mxu0 0
    %1940 = vmatpush1.bf16.msra.mxu0 %v1550
    %1941 = vmatprep.subr.bf16.mxu0 0
    %1942 = vmatpush1.bf16.msra.mxu0 %v1549
    %1943 = vmatprep.subr.bf16.mxu0 0
    %1944 = vmatpush2.bf16.msra.mxu0 0
    %1945 = vmatprep.subr.bf16.mxu0 0
    %1946 = vmatpush2.bf16.msra.mxu0 0
    %1947 = vmatprep.subr.bf16.mxu0 0
    %1948 = vmatpush2.bf16.msra.mxu0 0
    %1949 = vmatprep.subr.bf16.mxu0 0
    %1950 = vmatpush2.bf16.msra.mxu0 0
    %1951 = vmatprep.subr.bf16.mxu0 0
    %1952 = vmatpush2.bf16.msra.mxu0 0
    %1953 = vmatprep.subr.bf16.mxu0 0
    %1954 = vmatpush2.bf16.msra.mxu0 0
    %1955 = vmatprep.subr.bf16.mxu0 0
    %1956 = vmatpush2.bf16.msra.mxu0 0
    %1957 = vmatprep.subr.bf16.mxu0 0
    %1958 = vmatpush2.bf16.msra.mxu0 0
    %1959 = vmatprep.mubr.bf16.mxu0 0
    %1960 = vmatmul.mubr.bf16.gmra.mxu0 %v1815
    %v1961 = vpop.f32.mrf.mxu0
    %v1962 = vadd.f32 0.0, %v1961
    %v1963 = vpop.f32.mrf.mxu0
    %v1964 = vpop.f32.mrf.mxu0
    %v1965 = vpop.f32.mrf.mxu0
    %1966 = vdwg.mxu0
    %v1967 = vadd.f32 %v1257, %v1962
    %v1968 = vmul.f32 %v1967, 0.5
    %v1969 = vsel %vm75, %v1967, %v1968
    %v1970 = vtanh.pop %v1969
    %v1971 = vmul.f32 %v1970, 0.5
    %v1972 = vadd.f32 %v1971, 0.5
    %v1973 = vsel %vm75, %v1970, %v1972
    %v1974 = vmul.f32 %v1973, %v1803
    %1976 = vrot.lane.b32.xlu0 %v1973, 64
    %v1977 = vpop.permute.xlu0 %1976
    %v1979 = vmul.f32 %v1973, %v1977
    %1981 = vrot.lane.b32.xlu0 %v1979, 32
    %v1982 = vpop.permute.xlu0 %1981
    %v1984 = vadd.f32 %v1974, %v1982
    %v1985 = vtanh.pop %v1984
    %1987 = vrot.lane.b32.xlu0 %v1985, 64
    %v1988 = vpop.permute.xlu0 %1987
    %v1990 = vmul.f32 %v1973, %v1988
    %v1991 = vpack.c.bf16 %v1990, %v1990
    %1993 = vrot.lane.b32.xlu0 %v1991, 32
    %v1994 = vpop.permute.xlu0 %1993
    %v1996 = vsel %vm541, %v1994, 0
    %1998 = vmatprep.subr.bf16.mxu0 0
    %1999 = vmatpush1.bf16.msra.mxu0 0
    %2000 = vmatprep.subr.bf16.mxu0 0
    %2001 = vmatpush1.bf16.msra.mxu0 0
    %2002 = vmatprep.subr.bf16.mxu0 0
    %2003 = vmatpush1.bf16.msra.mxu0 0
    %2004 = vmatprep.subr.bf16.mxu0 0
    %2005 = vmatpush1.bf16.msra.mxu0 0
    %2006 = vmatprep.subr.bf16.mxu0 0
    %2007 = vmatpush1.bf16.msra.mxu0 0
    %2008 = vmatprep.subr.bf16.mxu0 0
    %2009 = vmatpush1.bf16.msra.mxu0 0
    %2010 = vmatprep.subr.bf16.mxu0 0
    %2011 = vmatpush1.bf16.msra.mxu0 %v1630
    %2012 = vmatprep.subr.bf16.mxu0 0
    %2013 = vmatpush1.bf16.msra.mxu0 %v1629
    %2014 = vmatprep.subr.bf16.mxu0 0
    %2015 = vmatpush2.bf16.msra.mxu0 0
    %2016 = vmatprep.subr.bf16.mxu0 0
    %2017 = vmatpush2.bf16.msra.mxu0 0
    %2018 = vmatprep.subr.bf16.mxu0 0
    %2019 = vmatpush2.bf16.msra.mxu0 0
    %2020 = vmatprep.subr.bf16.mxu0 0
    %2021 = vmatpush2.bf16.msra.mxu0 0
    %2022 = vmatprep.subr.bf16.mxu0 0
    %2023 = vmatpush2.bf16.msra.mxu0 0
    %2024 = vmatprep.subr.bf16.mxu0 0
    %2025 = vmatpush2.bf16.msra.mxu0 0
    %2026 = vmatprep.subr.bf16.mxu0 0
    %2027 = vmatpush2.bf16.msra.mxu0 0
    %2028 = vmatprep.subr.bf16.mxu0 0
    %2029 = vmatpush2.bf16.msra.mxu0 0
    %2030 = vmatprep.mubr.bf16.mxu0 0
    %2031 = vmatmul.mubr.bf16.gmra.mxu0 %v1996
    %v2032 = vpop.f32.mrf.mxu0
    %v2033 = vadd.f32 %v1922, %v2032
    %v2034 = vpop.f32.mrf.mxu0
    %v2035 = vpop.f32.mrf.mxu0
    %v2036 = vpop.f32.mrf.mxu0
    %2037 = vdwg.mxu0
    %v2038 = vmul.f32 %v2033, 0.5
    %v2039 = vsel %vm75, %v2033, %v2038
    %v2040 = vtanh.pop %v2039
    %v2041 = vmul.f32 %v2040, 0.5
    %v2042 = vadd.f32 %v2041, 0.5
    %v2043 = vsel %vm75, %v2040, %v2042
    %v2044 = vmul.f32 %v2043, %v1873
    %2046 = vrot.lane.b32.xlu0 %v2043, 64
    %v2047 = vpop.permute.xlu0 %2046
    %v2049 = vmul.f32 %v2043, %v2047
    %2051 = vrot.lane.b32.xlu0 %v2049, 32
    %v2052 = vpop.permute.xlu0 %2051
    %v2054 = vadd.f32 %v2044, %v2052
    %v2055 = vtanh.pop %v2054
    %2057 = vrot.lane.b32.xlu0 %v2055, 64
    %v2058 = vpop.permute.xlu0 %2057
    %v2060 = vmul.f32 %v2043, %v2058
    %v2061 = vpack.c.bf16 %v2060, %v2060
    %2063 = vrot.lane.b32.xlu0 %v2061, 32
    %v2064 = vpop.permute.xlu0 %2063
    %v2066 = vsel %vm541, %v2064, 0
    %2068 = vmatprep.subr.bf16.mxu0 0
    %2069 = vmatpush1.bf16.msra.mxu0 0
    %2070 = vmatprep.subr.bf16.mxu0 0
    %2071 = vmatpush1.bf16.msra.mxu0 0
    %2072 = vmatprep.subr.bf16.mxu0 0
    %2073 = vmatpush1.bf16.msra.mxu0 0
    %2074 = vmatprep.subr.bf16.mxu0 0
    %2075 = vmatpush1.bf16.msra.mxu0 0
    %2076 = vmatprep.subr.bf16.mxu0 0
    %2077 = vmatpush1.bf16.msra.mxu0 0
    %2078 = vmatprep.subr.bf16.mxu0 0
    %2079 = vmatpush1.bf16.msra.mxu0 0
    %2080 = vmatprep.subr.bf16.mxu0 0
    %2081 = vmatpush1.bf16.msra.mxu0 %v1498
    %2082 = vmatprep.subr.bf16.mxu0 0
    %2083 = vmatpush1.bf16.msra.mxu0 %v1497
    %2084 = vmatprep.subr.bf16.mxu0 0
    %2085 = vmatpush2.bf16.msra.mxu0 0
    %2086 = vmatprep.subr.bf16.mxu0 0
    %2087 = vmatpush2.bf16.msra.mxu0 0
    %2088 = vmatprep.subr.bf16.mxu0 0
    %2089 = vmatpush2.bf16.msra.mxu0 0
    %2090 = vmatprep.subr.bf16.mxu0 0
    %2091 = vmatpush2.bf16.msra.mxu0 0
    %2092 = vmatprep.subr.bf16.mxu0 0
    %2093 = vmatpush2.bf16.msra.mxu0 0
    %2094 = vmatprep.subr.bf16.mxu0 0
    %2095 = vmatpush2.bf16.msra.mxu0 0
    %2096 = vmatprep.subr.bf16.mxu0 0
    %2097 = vmatpush2.bf16.msra.mxu0 0
    %2098 = vmatprep.subr.bf16.mxu0 0
    %2099 = vmatpush2.bf16.msra.mxu0 0
    %2100 = vmatprep.mubr.bf16.mxu0 0
    %2101 = vmatmul.mubr.bf16.gmra.mxu0 %v2066
    %v2102 = vpop.f32.mrf.mxu0
    %v2103 = vadd.f32 %v1487, %v2102
    %v2104 = vpop.f32.mrf.mxu0
    %v2105 = vpop.f32.mrf.mxu0
    %v2106 = vpop.f32.mrf.mxu0
    %2107 = vdwg.mxu0
    %2108 = vmatprep.subr.bf16.mxu0 0
    %2109 = vmatpush1.bf16.msra.mxu0 0
    %2110 = vmatprep.subr.bf16.mxu0 0
    %2111 = vmatpush1.bf16.msra.mxu0 0
    %2112 = vmatprep.subr.bf16.mxu0 0
    %2113 = vmatpush1.bf16.msra.mxu0 0
    %2114 = vmatprep.subr.bf16.mxu0 0
    %2115 = vmatpush1.bf16.msra.mxu0 0
    %2116 = vmatprep.subr.bf16.mxu0 0
    %2117 = vmatpush1.bf16.msra.mxu0 0
    %2118 = vmatprep.subr.bf16.mxu0 0
    %2119 = vmatpush1.bf16.msra.mxu0 0
    %2120 = vmatprep.subr.bf16.mxu0 0
    %2121 = vmatpush1.bf16.msra.mxu0 %v1550
    %2122 = vmatprep.subr.bf16.mxu0 0
    %2123 = vmatpush1.bf16.msra.mxu0 %v1549
    %2124 = vmatprep.subr.bf16.mxu0 0
    %2125 = vmatpush2.bf16.msra.mxu0 0
    %2126 = vmatprep.subr.bf16.mxu0 0
    %2127 = vmatpush2.bf16.msra.mxu0 0
    %2128 = vmatprep.subr.bf16.mxu0 0
    %2129 = vmatpush2.bf16.msra.mxu0 0
    %2130 = vmatprep.subr.bf16.mxu0 0
    %2131 = vmatpush2.bf16.msra.mxu0 0
    %2132 = vmatprep.subr.bf16.mxu0 0
    %2133 = vmatpush2.bf16.msra.mxu0 0
    %2134 = vmatprep.subr.bf16.mxu0 0
    %2135 = vmatpush2.bf16.msra.mxu0 0
    %2136 = vmatprep.subr.bf16.mxu0 0
    %2137 = vmatpush2.bf16.msra.mxu0 0
    %2138 = vmatprep.subr.bf16.mxu0 0
    %2139 = vmatpush2.bf16.msra.mxu0 0
    %2140 = vmatprep.mubr.bf16.mxu0 0
    %2141 = vmatmul.mubr.bf16.gmra.mxu0 %v1996
    %v2142 = vpop.f32.mrf.mxu0
    %v2143 = vadd.f32 0.0, %v2142
    %v2144 = vpop.f32.mrf.mxu0
    %v2145 = vpop.f32.mrf.mxu0
    %v2146 = vpop.f32.mrf.mxu0
    %2147 = vdwg.mxu0
    %v2148 = vadd.f32 %v1478, %v2143
    %v2149 = vmul.f32 %v2148, 0.5
    %v2150 = vsel %vm75, %v2148, %v2149
    %v2151 = vtanh.pop %v2150
    %v2152 = vmul.f32 %v2151, 0.5
    %v2153 = vadd.f32 %v2152, 0.5
    %v2154 = vsel %vm75, %v2151, %v2153
    %v2155 = vmul.f32 %v2154, %v1984
    %2157 = vrot.lane.b32.xlu0 %v2154, 64
    %v2158 = vpop.permute.xlu0 %2157
    %v2160 = vmul.f32 %v2154, %v2158
    %2162 = vrot.lane.b32.xlu0 %v2160, 32
    %v2163 = vpop.permute.xlu0 %2162
    %v2165 = vadd.f32 %v2155, %v2163
    %v2166 = vtanh.pop %v2165
    %2168 = vrot.lane.b32.xlu0 %v2166, 64
    %v2169 = vpop.permute.xlu0 %2168
    %v2171 = vmul.f32 %v2154, %v2169
    %v2172 = vpack.c.bf16 %v2171, %v2171
    %2174 = vrot.lane.b32.xlu0 %v2172, 32
    %v2175 = vpop.permute.xlu0 %2174
    %v2177 = vsel %vm541, %v2175, 0
    %2179 = vmatprep.subr.bf16.mxu0 0
    %2180 = vmatpush1.bf16.msra.mxu0 0
    %2181 = vmatprep.subr.bf16.mxu0 0
    %2182 = vmatpush1.bf16.msra.mxu0 0
    %2183 = vmatprep.subr.bf16.mxu0 0
    %2184 = vmatpush1.bf16.msra.mxu0 0
    %2185 = vmatprep.subr.bf16.mxu0 0
    %2186 = vmatpush1.bf16.msra.mxu0 0
    %2187 = vmatprep.subr.bf16.mxu0 0
    %2188 = vmatpush1.bf16.msra.mxu0 0
    %2189 = vmatprep.subr.bf16.mxu0 0
    %2190 = vmatpush1.bf16.msra.mxu0 0
    %2191 = vmatprep.subr.bf16.mxu0 0
    %2192 = vmatpush1.bf16.msra.mxu0 %v1630
    %2193 = vmatprep.subr.bf16.mxu0 0
    %2194 = vmatpush1.bf16.msra.mxu0 %v1629
    %2195 = vmatprep.subr.bf16.mxu0 0
    %2196 = vmatpush2.bf16.msra.mxu0 0
    %2197 = vmatprep.subr.bf16.mxu0 0
    %2198 = vmatpush2.bf16.msra.mxu0 0
    %2199 = vmatprep.subr.bf16.mxu0 0
    %2200 = vmatpush2.bf16.msra.mxu0 0
    %2201 = vmatprep.subr.bf16.mxu0 0
    %2202 = vmatpush2.bf16.msra.mxu0 0
    %2203 = vmatprep.subr.bf16.mxu0 0
    %2204 = vmatpush2.bf16.msra.mxu0 0
    %2205 = vmatprep.subr.bf16.mxu0 0
    %2206 = vmatpush2.bf16.msra.mxu0 0
    %2207 = vmatprep.subr.bf16.mxu0 0
    %2208 = vmatpush2.bf16.msra.mxu0 0
    %2209 = vmatprep.subr.bf16.mxu0 0
    %2210 = vmatpush2.bf16.msra.mxu0 0
    %2211 = vmatprep.mubr.bf16.mxu0 0
    %2212 = vmatmul.mubr.bf16.gmra.mxu0 %v2177
    %v2213 = vpop.f32.mrf.mxu0
    %v2214 = vadd.f32 %v2103, %v2213
    %v2215 = vpop.f32.mrf.mxu0
    %v2216 = vpop.f32.mrf.mxu0
    %v2217 = vpop.f32.mrf.mxu0
    %2218 = vdwg.mxu0
    %v2219 = vmul.f32 %v2214, 0.5
    %v2220 = vsel %vm75, %v2214, %v2219
    %v2221 = vtanh.pop %v2220
    %v2222 = vmul.f32 %v2221, 0.5
    %v2223 = vadd.f32 %v2222, 0.5
    %v2224 = vsel %vm75, %v2221, %v2223
    %v2225 = vmul.f32 %v2224, %v2054
    %2227 = vrot.lane.b32.xlu0 %v2224, 64
    %v2228 = vpop.permute.xlu0 %2227
    %v2230 = vmul.f32 %v2224, %v2228
    %2232 = vrot.lane.b32.xlu0 %v2230, 32
    %v2233 = vpop.permute.xlu0 %2232
    %v2235 = vadd.f32 %v2225, %v2233
    %v2236 = vtanh.pop %v2235
    %2238 = vrot.lane.b32.xlu0 %v2236, 64
    %v2239 = vpop.permute.xlu0 %2238
    %v2241 = vmul.f32 %v2224, %v2239
    %v2242 = vld [vmem:[%s15] sm:$0xf]
    %v2243 = vld [vmem:[%s15 + $0x4] sm:$0xf]
    %v2244 = vld [vmem:[%s15 + $0x8] sm:$0xf]
    %v2245 = vld [vmem:[%s15 + $0xc] sm:$0xf]
    %v2246 = vpack.c.bf16 %v2241, %v2241
    %v2247 = vld [vmem:[%s16] sm:$0x1]
    %v2249 = vlaneseq
    %v2250 = vshrl.u32 %v2249, 7
    %v2251 = vsub.s32 0, %v2250
    %v2252 = vrot.slane %v2247, %v2251
    %2255 = vrot.lane.b32.xlu0 %v2246, 32
    %v2256 = vpop.permute.xlu0 %2255
    %v2261 = vunpack.c.l.b16 %v2242
    %v2262 = vunpack.c.l.b16 %v2243
    %v2263 = vunpack.c.l.b16 %v2244
    %v2264 = vunpack.c.l.b16 %v2245
    %v2265 = vpack.c.b16 %v2262, %v2261
    %v2266 = vpack.c.b16 %v2264, %v2263
    %v2270 = vsel %vm541, %v2256, 0
    %2272 = vmatprep.subr.bf16.mxu0 0
    %2273 = vmatpush1.bf16.msra.mxu0 0
    %2274 = vmatprep.subr.bf16.mxu0 0
    %2275 = vmatpush1.bf16.msra.mxu0 0
    %2276 = vmatprep.subr.bf16.mxu0 0
    %2277 = vmatpush1.bf16.msra.mxu0 0
    %2278 = vmatprep.subr.bf16.mxu0 0
    %2279 = vmatpush1.bf16.msra.mxu0 0
    %2280 = vmatprep.subr.bf16.mxu0 0
    %2281 = vmatpush1.bf16.msra.mxu0 0
    %2282 = vmatprep.subr.bf16.mxu0 0
    %2283 = vmatpush1.bf16.msra.mxu0 0
    %2284 = vmatprep.subr.bf16.mxu0 0
    %2285 = vmatpush1.bf16.msra.mxu0 %v2266
    %2286 = vmatprep.subr.bf16.mxu0 0
    %2287 = vmatpush1.bf16.msra.mxu0 %v2265
    %2288 = vmatprep.subr.bf16.mxu0 0
    %2289 = vmatpush2.bf16.msra.mxu0 0
    %2290 = vmatprep.subr.bf16.mxu0 0
    %2291 = vmatpush2.bf16.msra.mxu0 0
    %2292 = vmatprep.subr.bf16.mxu0 0
    %2293 = vmatpush2.bf16.msra.mxu0 0
    %2294 = vmatprep.subr.bf16.mxu0 0
    %2295 = vmatpush2.bf16.msra.mxu0 0
    %2296 = vmatprep.subr.bf16.mxu0 0
    %2297 = vmatpush2.bf16.msra.mxu0 0
    %2298 = vmatprep.subr.bf16.mxu0 0
    %2299 = vmatpush2.bf16.msra.mxu0 0
    %2300 = vmatprep.subr.bf16.mxu0 0
    %2301 = vmatpush2.bf16.msra.mxu0 0
    %2302 = vmatprep.subr.bf16.mxu0 0
    %2303 = vmatpush2.bf16.msra.mxu0 0
    %2304 = vmatprep.mubr.bf16.mxu0 0
    %2305 = vmatmul.mubr.bf16.gmra.mxu0 %v2270
    %v2306 = vpop.f32.mrf.mxu0
    %v2307 = vadd.f32 %v2252, %v2306
    %v2308 = vpop.f32.mrf.mxu0
    %v2309 = vpop.f32.mrf.mxu0
    %v2310 = vpop.f32.mrf.mxu0
    %2311 = vdwg.mxu0
    %2312 = vst [vmem:[%s17] sm:$0xff] %v2307
    // Predicated region
    $region74: #{recurrency_block.1} parent=1 // pred_check
      _
    $region75: #{recurrency_block.1} parent=1 // pred_check_branch
      %2314 = sbr.rel (0) target = $region77
    $region76: #{recurrency_block.1} parent=1 // pred_region
      _
    $region77: #{recurrency_block.1} parent=1 // pred_fallthru
      _
    // Predicated region
    $region78: #{recurrency_block.1} parent=1 // pred_check
      _
    $region79: #{recurrency_block.1} parent=1 // pred_check_branch
      %2316 = sbr.rel (0) target = $region81
    $region80: #{recurrency_block.1} parent=1 // pred_region
      _
    $region81: #{recurrency_block.1} parent=1 // pred_fallthru
      _
    %2317 = vsyncpa [#allocation3], 1

</llo_original>
